<compile_context>
chip_gen: v6e
topology: v6e:2x2x1
jax: 0.10.0
libtpu: 0.0.40
codegen_flags: <defaults>
</compile_context>

<pallas_src>
import functools

import jax
import jax.numpy as jnp
from jax.experimental import pallas as pl
from jax.experimental.pallas import tpu as pltpu


# ----------------------------- Pallas kernels --------------------------------

def fused_gcn_layer_kernel(a_ref, dr_ref, dc_ref, x_ref, w_ref, b_ref,
                           out_ref, acc_ref, *, apply_relu):
    """One tile-step of: out[i] = act( sum_k A_hat[i,k] @ (x[k] @ W) + b ).

    A_hat is formed on the fly from the raw 0/1 (A+I) tile and the two D^{-1/2}
    slices (VPU work, hidden under the HBM-bound A stream).  The projection
    x[k] @ W is recomputed per row tile with W resident in VMEM, which removes
    the separate projection kernel and its intermediate HBM round trip.
    """
    k = pl.program_id(1)

    @pl.when(k == 0)
    def _():
        acc_ref[...] = jnp.zeros_like(acc_ref)

    # Normalize the raw (A+I) tile in f32 (0/1 entries are exact), then downcast
    # to bf16 for the MXU.
    a_hat = (dr_ref[...] * a_ref[...].astype(jnp.float32) * dc_ref[...]
             ).astype(jnp.bfloat16)

    # Fused feature projection for this k-slice of rows (W is VMEM-resident).
    xw = jnp.dot(x_ref[...], w_ref[...],
                 preferred_element_type=jnp.float32).astype(jnp.bfloat16)

    acc_ref[...] += jnp.dot(a_hat, xw, preferred_element_type=jnp.float32)

    @pl.when(k == pl.num_programs(1) - 1)
    def _():
        res = acc_ref[...] + b_ref[...]          # bias-add on the f32 accumulator
        if apply_relu:
            res = jnp.maximum(res, 0.0)          # ReLU on f32 before downcast
        out_ref[...] = res.astype(out_ref.dtype)


def fused_encoder_kernel(a_ref, dr_ref, dc_ref, x_ref, w1_ref, b1_ref,
                         wcat_ref, bcat_ref, out_ref):
    """Whole encoder in one kernel (small-N path): everything VMEM-resident,
    A read once, a single launch.  out = [mu | logvar]."""
    a_hat = (dr_ref[...] * a_ref[...].astype(jnp.float32) * dc_ref[...]
             ).astype(jnp.bfloat16)
    xw = jnp.dot(x_ref[...], w1_ref[...],
                 preferred_element_type=jnp.float32).astype(jnp.bfloat16)
    h = jnp.maximum(
        jnp.dot(a_hat, xw, preferred_element_type=jnp.float32) + b1_ref[...],
        0.0).astype(jnp.bfloat16)
    hw = jnp.dot(h, wcat_ref[...],
                 preferred_element_type=jnp.float32).astype(jnp.bfloat16)
    out = jnp.dot(a_hat, hw, preferred_element_type=jnp.float32) + bcat_ref[...]
    out_ref[...] = out.astype(out_ref.dtype)


# ----------------------------- wrappers ---------------------------------------

def _vmem_capacity_bytes():
    try:
        cap = getattr(pltpu.get_tpu_info(), "vmem_capacity_bytes", None)
        if cap:
            return int(cap)
    except Exception:
        pass
    return 64 << 20            # conservative fallback: v7x physical VMEM


def _vmem_budget_bytes():
    # User-buffer budget with headroom for compiler scratch:
    # ~40 MiB on v7x (64 MiB physical), up to ~96 MiB on v5e/v6e (128 MiB).
    return int(min(0.625 * _vmem_capacity_bytes(), 96 << 20))


def _choose_tile(n, align, target):
    """Largest multiple of `align` that divides n and is <= target, else full n."""
    t = min(target, n)
    t -= t % align
    while t >= align:
        if n % t == 0:
            return t
        t -= align
    return n


def _fused_gcn_layer(a, dr, dc, x, w, b, *, tm, tk, apply_relu, out_dtype):
    """act( A_hat @ (x @ W) + b ) with A:[N,N] tiled (tm, tk); f32 accumulator."""
    n = a.shape[0]
    fin = x.shape[1]
    fout = w.shape[1]
    out_itemsize = jnp.dtype(out_dtype).itemsize

    # VMEM need: double-buffered streamed tiles + resident W/b + accumulator.
    vmem_need = (2 * tm * tk * a.dtype.itemsize
                 + 2 * tk * fin * x.dtype.itemsize
                 + 2 * (tm + tk) * 4
                 + fin * fout * w.dtype.itemsize
                 + fout * 4
                 + 2 * tm * fout * out_itemsize
                 + tm * fout * 4)
    vmem_limit = int(min(max(2 * vmem_need, 32 << 20), _vmem_budget_bytes()))

    cost = pl.CostEstimate(
        flops=2 * n * n * fout + 2 * (n // tm) * n * fin * fout,
        transcendentals=0,
        bytes_accessed=(a.size * a.dtype.itemsize
                        + (n // tm) * x.size * x.dtype.itemsize
                        + fin * fout * w.dtype.itemsize
                        + fout * 4 + 2 * n * 4
                        + n * fout * out_itemsize),
    )

    kernel = functools.partial(fused_gcn_layer_kernel, apply_relu=apply_relu)
    return pl.pallas_call(
        kernel,
        out_shape=jax.ShapeDtypeStruct((n, fout), out_dtype),
        grid_spec=pltpu.PrefetchScalarGridSpec(
            num_scalar_prefetch=0,
            grid=(n // tm, n // tk),                          # reduction axis last
            in_specs=[
                pl.BlockSpec((tm, tk), lambda i, k: (i, k)),     # raw A+I tile
                pl.BlockSpec((tm, 1), lambda i, k: (i, 0)),      # D^{-1/2} rows
                pl.BlockSpec((1, tk), lambda i, k: (0, k)),      # D^{-1/2} cols
                pl.BlockSpec((tk, fin), lambda i, k: (k, 0)),    # x rows for this k
                pl.BlockSpec((fin, fout), lambda i, k: (0, 0)),  # W (VMEM-resident)
                pl.BlockSpec((1, fout), lambda i, k: (0, 0)),    # bias
            ],
            out_specs=pl.BlockSpec((tm, fout), lambda i, k: (i, 0)),
            scratch_shapes=[pltpu.VMEM((tm, fout), jnp.float32)],
        ),
        compiler_params=pltpu.CompilerParams(
            dimension_semantics=("parallel", "arbitrary"),
            vmem_limit_bytes=vmem_limit),
        cost_estimate=cost,
    )(a, dr, dc, x, w, b)


def _fused_encoder_call(a, dr, dc, x, w1, b1, wcat, bcat):
    """Single-launch whole-encoder path for graphs that fit in VMEM."""
    n = a.shape[0]
    fcat = wcat.shape[1]
    vmem_limit = int(min(_vmem_budget_bytes(), 64 << 20))
    return pl.pallas_call(
        fused_encoder_kernel,
        out_shape=jax.ShapeDtypeStruct((n, fcat), jnp.float32),
        grid_spec=pltpu.PrefetchScalarGridSpec(
            num_scalar_prefetch=0,
            grid=(1,),
            in_specs=[
                pl.BlockSpec(a.shape, lambda i: (0, 0)),
                pl.BlockSpec(dr.shape, lambda i: (0, 0)),
                pl.BlockSpec(dc.shape, lambda i: (0, 0)),
                pl.BlockSpec(x.shape, lambda i: (0, 0)),
                pl.BlockSpec(w1.shape, lambda i: (0, 0)),
                pl.BlockSpec(b1.shape, lambda i: (0, 0)),
                pl.BlockSpec(wcat.shape, lambda i: (0, 0)),
                pl.BlockSpec(bcat.shape, lambda i: (0, 0)),
            ],
            out_specs=pl.BlockSpec((n, fcat), lambda i: (0, 0)),
        ),
        compiler_params=pltpu.CompilerParams(
            dimension_semantics=("arbitrary",),
            vmem_limit_bytes=vmem_limit),
    )(a, dr, dc, x, w1, b1, wcat, bcat)


def encoder_forward(a_plus_i, dinv, x, params, *, tm=None, tk=None, fuse_all=None):
    """Full encoder forward: returns (mu, logvar).

    a_plus_i : [N, N] bf16 raw 0/1 adjacency with self-loops (unnormalized).
    dinv     : [N]    f32  D^{-1/2} of (A + I); normalization applied in-kernel.
    """
    n = x.shape[0]
    out_dim = params["w_mu"].shape[1]
    hid = params["w1"].shape[1]
    fin = x.shape[1]

    a_bf = a_plus_i.astype(jnp.bfloat16)
    dr = dinv.astype(jnp.float32).reshape(n, 1)
    dc = dinv.astype(jnp.float32).reshape(1, n)
    x_bf = x.astype(jnp.bfloat16)
    w1 = params["w1"].astype(jnp.bfloat16)
    w_cat = jnp.concatenate([params["w_mu"], params["w_lv"]],
                            axis=1).astype(jnp.bfloat16)       # fused mu|logvar
    b1 = params["b1"].astype(jnp.float32).reshape(1, hid)
    b_cat = jnp.concatenate([params["b_mu"], params["b_lv"]],
                            axis=1).astype(jnp.float32)

    # Small-graph fast path: everything (A + intermediates) fits in VMEM.
    if fuse_all is None:
        approx_resident = (8 * n * n                         # A bf16 + f32 a_hat temp
                           + 8 * n * (hid + 2 * out_dim)     # xw/h/hw/out slabs
                           + 4 * n * fin + (64 << 10))
        fuse_all = approx_resident <= _vmem_budget_bytes() // 3
    if fuse_all:
        out2 = _fused_encoder_call(a_bf, dr, dc, x_bf, w1, b1, w_cat, b_cat)
        return out2[:, :out_dim], out2[:, out_dim:]

    # General path: two fused (normalize + project + aggregate) calls.
    # Row tile kept to <= n//2 so the "parallel" axis has >= 2 tiles for v7x
    # megacore; reduction tile pushed toward 1024 (HBM-bound on the A stream).
    tm_ = tm if (tm and n % tm == 0 and tm % 8 == 0) else \
        _choose_tile(n, 8, max(8, min(1024, n // 2)))
    tk_ = tk if (tk and n % tk == 0 and (tk % 128 == 0 or tk == n)) else \
        _choose_tile(n, 128, 1024)

    # Layer 1: h = relu(A_hat @ (x @ W1) + b1)
    h = _fused_gcn_layer(a_bf, dr, dc, x_bf, w1, b1,
                         tm=tm_, tk=tk_, apply_relu=True,
                         out_dtype=jnp.bfloat16)                          # [N,hid]
    # Layer 2 (fused): [mu|logvar] = A_hat @ (h @ [Wmu|Wlv]) + [bmu|blv]
    out2 = _fused_gcn_layer(a_bf, dr, dc, h, w_cat, b_cat,
                            tm=tm_, tk=tk_, apply_relu=False,
                            out_dtype=jnp.float32)                        # [N,2*out]

    return out2[:, :out_dim], out2[:, out_dim:]


# ------------------------------ JAX glue --------------------------------------

def build_graph_operands(edge_index, num_nodes):
    """Raw dense (A + I) in bf16 (0/1 entries, exact) plus D^{-1/2} in f32.
    The symmetric normalization itself is applied inside the kernels."""
    src, dst = edge_index
    self_loop = jnp.arange(num_nodes, dtype=src.dtype)
    src = jnp.concatenate([src, self_loop])
    dst = jnp.concatenate([dst, self_loop])
    a = jnp.zeros((num_nodes, num_nodes), jnp.float32).at[dst, src].add(1.0)
    deg = a.sum(axis=1)
    dinv = jnp.where(deg > 0, 1.0 / jnp.sqrt(deg), 0.0)
    return a.astype(jnp.bfloat16), dinv


def init_params(key, in_channels, out_channels):
    hid = 2 * out_channels
    k1, k2, k3 = jax.random.split(key, 3)

    def glorot(k, fan_in, fan_out):
        lim = jnp.sqrt(6.0 / (fan_in + fan_out))
        return jax.random.uniform(k, (fan_in, fan_out), jnp.float32, -lim, lim)

    return {
        "w1":   glorot(k1, in_channels, hid),
        "b1":   jnp.zeros((1, hid), jnp.float32),
        "w_mu": glorot(k2, hid, out_channels),
        "b_mu": jnp.zeros((1, out_channels), jnp.float32),
        "w_lv": glorot(k3, hid, out_channels),
        "b_lv": jnp.zeros((1, out_channels), jnp.float32),
    }


def _a_hat_f32(a_plus_i, dinv):
    return dinv[:, None] * a_plus_i.astype(jnp.float32) * dinv[None, :]


def reference_forward_f32(a_plus_i, dinv, x, p):
    """Exact f32 math of the original module."""
    a_hat = _a_hat_f32(a_plus_i, dinv)
    h = jnp.maximum(a_hat @ (x @ p["w1"]) + p["b1"], 0.0)
    mu = a_hat @ (h @ p["w_mu"]) + p["b_mu"]
    lv = a_hat @ (h @ p["w_lv"]) + p["b_lv"]
    return mu, lv


def reference_forward_bf16(a_plus_i, dinv, x, p):
    """Pure-JAX reference mimicking the kernels' bf16 casts / f32 accumulation."""
    a = _a_hat_f32(a_plus_i, dinv).astype(jnp.bfloat16)
    xb = x.astype(jnp.bfloat16)
    w1 = p["w1"].astype(jnp.bfloat16)
    w_cat = jnp.concatenate([p["w_mu"], p["w_lv"]], 1).astype(jnp.bfloat16)
    b1 = p["b1"]
    b_cat = jnp.concatenate([p["b_mu"], p["b_lv"]], 1)
    xw = jnp.dot(xb, w1, preferred_element_type=jnp.float32).astype(jnp.bfloat16)
    h = jnp.maximum(jnp.dot(a, xw, preferred_element_type=jnp.float32) + b1,
                    0.0).astype(jnp.bfloat16)
    hw = jnp.dot(h, w_cat, preferred_element_type=jnp.float32).astype(jnp.bfloat16)
    out = jnp.dot(a, hw, preferred_element_type=jnp.float32) + b_cat
    od = p["w_mu"].shape[1]
    return out[:, :od], out[:, od:]


# -------------------------------- main -----------------------------------------

if __name__ == "__main__":
    num_nodes = 256
    in_channels = 16
    out_channels = 8

    key = jax.random.PRNGKey(0)
    k_x, k_p = jax.random.split(key)

    # node features
    x = jax.random.normal(k_x, (num_nodes, in_channels), jnp.float32)

    # deterministic ring graph (both directions), PyG edge_index layout [2, E]
    idx = jnp.arange(num_nodes, dtype=jnp.int32)
    nxt = (idx + 1) % num_nodes
    edge_index = jnp.stack([jnp.concatenate([idx, nxt]),
                            jnp.concatenate([nxt, idx])], axis=0)

    a_plus_i, dinv = build_graph_operands(edge_index, num_nodes)
    params = init_params(k_p, in_channels, out_channels)

    # Path 1: auto-selected single fused pallas_call (whole encoder, A read once).
    mu, logvar = encoder_forward(a_plus_i, dinv, x, params)

    # Path 2: general tiled path (2x2 grid: parallel row tiles, arbitrary
    # reduction, persistent f32 VMEM accumulator, in-kernel normalization).
    mu_t, lv_t = encoder_forward(a_plus_i, dinv, x, params,
                                 tm=128, tk=128, fuse_all=False)

    jax.block_until_ready((mu, logvar, mu_t, lv_t))

    mu_bf, lv_bf = reference_forward_bf16(a_plus_i, dinv, x, params)
    mu_f32, lv_f32 = reference_forward_f32(a_plus_i, dinv, x, params)

    for m, l in ((mu, logvar), (mu_t, lv_t)):
        assert m.shape == (num_nodes, out_channels)
        assert l.shape == (num_nodes, out_channels)
        # tight check against the bf16-mimicking reference
        assert jnp.allclose(m, mu_bf, atol=1e-3, rtol=1e-3)
        assert jnp.allclose(l, lv_bf, atol=1e-3, rtol=1e-3)
        # loose semantic check against the exact f32 module math
        assert jnp.allclose(m, mu_f32, atol=7e-2, rtol=7e-2)
        assert jnp.allclose(l, lv_f32, atol=7e-2, rtol=7e-2)

    print("KERNEL_OK")
</pallas_src>

<mosaic_0001>
module attributes {stable_mosaic.version = 11 : i64} {
  func.func @fused_encoder_kernel(%arg0: i32, %arg1: memref<256x256xbf16, #tpu.memory_space<vmem>>, %arg2: memref<256x1xf32, #tpu.memory_space<vmem>>, %arg3: memref<1x256xf32, #tpu.memory_space<vmem>>, %arg4: memref<256x16xbf16, #tpu.memory_space<vmem>>, %arg5: memref<16x16xbf16, #tpu.memory_space<vmem>>, %arg6: memref<1x16xf32, #tpu.memory_space<vmem>>, %arg7: memref<16x16xbf16, #tpu.memory_space<vmem>>, %arg8: memref<1x16xf32, #tpu.memory_space<vmem>>, %arg9: memref<256x16xf32, #tpu.memory_space<vmem>>) attributes {dimension_semantics = [#tpu.dimension_semantics<arbitrary>], iteration_bounds = array<i64: 1>, scalar_prefetch = 0 : i64, scratch_operands = 0 : i64, tpu.core_type = #tpu.core_type<tc>, window_params = [{pipeline_mode = #tpu.pipeline_mode<synchronous>, transform_indices = @transform_0, window_bounds = array<i64: 256, 256>}, {pipeline_mode = #tpu.pipeline_mode<synchronous>, transform_indices = @transform_1, window_bounds = array<i64: 256, 1>}, {pipeline_mode = #tpu.pipeline_mode<synchronous>, transform_indices = @transform_2, window_bounds = array<i64: 1, 256>}, {pipeline_mode = #tpu.pipeline_mode<synchronous>, transform_indices = @transform_3, window_bounds = array<i64: 256, 16>}, {pipeline_mode = #tpu.pipeline_mode<synchronous>, transform_indices = @transform_4, window_bounds = array<i64: 16, 16>}, {pipeline_mode = #tpu.pipeline_mode<synchronous>, transform_indices = @transform_5, window_bounds = array<i64: 1, 16>}, {pipeline_mode = #tpu.pipeline_mode<synchronous>, transform_indices = @transform_6, window_bounds = array<i64: 16, 16>}, {pipeline_mode = #tpu.pipeline_mode<synchronous>, transform_indices = @transform_7, window_bounds = array<i64: 1, 16>}, {pipeline_mode = #tpu.pipeline_mode<synchronous>, transform_indices = @transform_8, window_bounds = array<i64: 256, 16>}]} {
    %c0 = arith.constant 0 : index
    %c0_0 = arith.constant 0 : index
    %0 = vector.load %arg2[%c0, %c0_0] : memref<256x1xf32, #tpu.memory_space<vmem>>, vector<256x1xf32>
    %c0_1 = arith.constant 0 : index
    %c0_2 = arith.constant 0 : index
    %1 = vector.load %arg1[%c0_1, %c0_2] : memref<256x256xbf16, #tpu.memory_space<vmem>>, vector<256x256xbf16>
    %2 = arith.extf %1 : vector<256x256xbf16> to vector<256x256xf32>
    %3 = vector.broadcast %0 : vector<256x1xf32> to vector<256x256xf32>
    %4 = arith.mulf %3, %2 : vector<256x256xf32>
    %c0_3 = arith.constant 0 : index
    %c0_4 = arith.constant 0 : index
    %5 = vector.load %arg3[%c0_3, %c0_4] : memref<1x256xf32, #tpu.memory_space<vmem>>, vector<1x256xf32>
    %6 = vector.broadcast %5 : vector<1x256xf32> to vector<256x256xf32>
    %7 = arith.mulf %4, %6 : vector<256x256xf32>
    %8 = arith.truncf %7 : vector<256x256xf32> to vector<256x256xbf16>
    %c0_5 = arith.constant 0 : index
    %c0_6 = arith.constant 0 : index
    %9 = vector.load %arg4[%c0_5, %c0_6] : memref<256x16xbf16, #tpu.memory_space<vmem>>, vector<256x16xbf16>
    %c0_7 = arith.constant 0 : index
    %c0_8 = arith.constant 0 : index
    %10 = vector.load %arg5[%c0_7, %c0_8] : memref<16x16xbf16, #tpu.memory_space<vmem>>, vector<16x16xbf16>
    %cst = arith.constant dense<0.000000e+00> : vector<256x16xf32>
    %11 = tpu.matmul %9, %10, %cst {dimension_numbers = #tpu.dot_dimension_numbers<[1], [0], [0], [1], [0, 0, 1, 1], [], []>} : vector<256x16xbf16>, vector<16x16xbf16>, vector<256x16xf32> -> vector<256x16xf32>
    %12 = arith.truncf %11 : vector<256x16xf32> to vector<256x16xbf16>
    %cst_9 = arith.constant dense<0.000000e+00> : vector<256x16xf32>
    %13 = tpu.matmul %8, %12, %cst_9 {dimension_numbers = #tpu.dot_dimension_numbers<[1], [0], [0], [1], [0, 0, 1, 1], [], []>} : vector<256x256xbf16>, vector<256x16xbf16>, vector<256x16xf32> -> vector<256x16xf32>
    %c0_10 = arith.constant 0 : index
    %c0_11 = arith.constant 0 : index
    %14 = vector.load %arg6[%c0_10, %c0_11] : memref<1x16xf32, #tpu.memory_space<vmem>>, vector<1x16xf32>
    %15 = vector.broadcast %14 : vector<1x16xf32> to vector<256x16xf32>
    %16 = arith.addf %13, %15 : vector<256x16xf32>
    %cst_12 = arith.constant 0.000000e+00 : f32
    %17 = vector.broadcast %cst_12 : f32 to vector<256x16xf32>
    %18 = arith.maximumf %16, %17 : vector<256x16xf32>
    %19 = arith.truncf %18 : vector<256x16xf32> to vector<256x16xbf16>
    %c0_13 = arith.constant 0 : index
    %c0_14 = arith.constant 0 : index
    %20 = vector.load %arg7[%c0_13, %c0_14] : memref<16x16xbf16, #tpu.memory_space<vmem>>, vector<16x16xbf16>
    %cst_15 = arith.constant dense<0.000000e+00> : vector<256x16xf32>
    %21 = tpu.matmul %19, %20, %cst_15 {dimension_numbers = #tpu.dot_dimension_numbers<[1], [0], [0], [1], [0, 0, 1, 1], [], []>} : vector<256x16xbf16>, vector<16x16xbf16>, vector<256x16xf32> -> vector<256x16xf32>
    %22 = arith.truncf %21 : vector<256x16xf32> to vector<256x16xbf16>
    %cst_16 = arith.constant dense<0.000000e+00> : vector<256x16xf32>
    %23 = tpu.matmul %8, %22, %cst_16 {dimension_numbers = #tpu.dot_dimension_numbers<[1], [0], [0], [1], [0, 0, 1, 1], [], []>} : vector<256x256xbf16>, vector<256x16xbf16>, vector<256x16xf32> -> vector<256x16xf32>
    %c0_17 = arith.constant 0 : index
    %c0_18 = arith.constant 0 : index
    %24 = vector.load %arg8[%c0_17, %c0_18] : memref<1x16xf32, #tpu.memory_space<vmem>>, vector<1x16xf32>
    %25 = vector.broadcast %24 : vector<1x16xf32> to vector<256x16xf32>
    %26 = arith.addf %23, %25 : vector<256x16xf32>
    %c0_19 = arith.constant 0 : index
    %c0_20 = arith.constant 0 : index
    %27 = vector.load %arg9[%c0_19, %c0_20] : memref<256x16xf32, #tpu.memory_space<vmem>>, vector<256x16xf32>
    tpu.vector_store %arg9[%c0_19, %c0_20], %26 {strides = array<i32>} : memref<256x16xf32, #tpu.memory_space<vmem>>, vector<256x16xf32>,
    return
  }
  func.func @transform_0(%arg0: i32) -> (i32, i32) {
    %c0_i32 = arith.constant 0 : i32
    %c0_i32_0 = arith.constant 0 : i32
    %c0_i32_1 = arith.constant 0 : i32
    return %c0_i32, %c0_i32_0 : i32, i32
  }
  func.func @transform_1(%arg0: i32) -> (i32, i32) {
    %c0_i32 = arith.constant 0 : i32
    %c0_i32_0 = arith.constant 0 : i32
    %c0_i32_1 = arith.constant 0 : i32
    return %c0_i32, %c0_i32_0 : i32, i32
  }
  func.func @transform_2(%arg0: i32) -> (i32, i32) {
    %c0_i32 = arith.constant 0 : i32
    %c0_i32_0 = arith.constant 0 : i32
    %c0_i32_1 = arith.constant 0 : i32
    return %c0_i32, %c0_i32_0 : i32, i32
  }
  func.func @transform_3(%arg0: i32) -> (i32, i32) {
    %c0_i32 = arith.constant 0 : i32
    %c0_i32_0 = arith.constant 0 : i32
    %c0_i32_1 = arith.constant 0 : i32
    return %c0_i32, %c0_i32_0 : i32, i32
  }
  func.func @transform_4(%arg0: i32) -> (i32, i32) {
    %c0_i32 = arith.constant 0 : i32
    %c0_i32_0 = arith.constant 0 : i32
    %c0_i32_1 = arith.constant 0 : i32
    return %c0_i32, %c0_i32_0 : i32, i32
  }
  func.func @transform_5(%arg0: i32) -> (i32, i32) {
    %c0_i32 = arith.constant 0 : i32
    %c0_i32_0 = arith.constant 0 : i32
    %c0_i32_1 = arith.constant 0 : i32
    return %c0_i32, %c0_i32_0 : i32, i32
  }
  func.func @transform_6(%arg0: i32) -> (i32, i32) {
    %c0_i32 = arith.constant 0 : i32
    %c0_i32_0 = arith.constant 0 : i32
    %c0_i32_1 = arith.constant 0 : i32
    return %c0_i32, %c0_i32_0 : i32, i32
  }
  func.func @transform_7(%arg0: i32) -> (i32, i32) {
    %c0_i32 = arith.constant 0 : i32
    %c0_i32_0 = arith.constant 0 : i32
    %c0_i32_1 = arith.constant 0 : i32
    return %c0_i32, %c0_i32_0 : i32, i32
  }
  func.func @transform_8(%arg0: i32) -> (i32, i32) {
    %c0_i32 = arith.constant 0 : i32
    %c0_i32_0 = arith.constant 0 : i32
    %c0_i32_1 = arith.constant 0 : i32
    return %c0_i32, %c0_i32_0 : i32, i32
  }
}

</mosaic_0001>

<llo_original>
// kernel: tpu_custom_call.1
$region0: #{tpu_custom_call.1}
  #allocation0 [shape = 'u32[]', space=smem, size = 0x4, offset = 0x4, fixed_abs, tag = 'smem constant byte address 0x4 - core index']
  #allocation1 [shape = 'u32[144,128]{1,0:T(1,128)}', space=vmem, size = 0x12000, scoped, tag = 'internal scratch']
  %s0 = inlined_call_operand.vmem [shape: bf16[256,256], index: 0, kind: input, shape index: {}]
  %s1 = inlined_call_operand.vmem [shape: f32[256,1], index: 1, kind: input, shape index: {}]
  %s2 = inlined_call_operand.vmem [shape: f32[1,256], index: 2, kind: input, shape index: {}]
  %s3 = inlined_call_operand.vmem [shape: bf16[256,16], index: 3, kind: input, shape index: {}]
  %s4 = inlined_call_operand.vmem [shape: bf16[16,16], index: 4, kind: input, shape index: {}]
  %s5 = inlined_call_operand.vmem [shape: f32[1,16], index: 5, kind: input, shape index: {}]
  %s6 = inlined_call_operand.vmem [shape: bf16[16,16], index: 6, kind: input, shape index: {}]
  %s7 = inlined_call_operand.vmem [shape: f32[1,16], index: 7, kind: input, shape index: {}]
  %s8 = inlined_call_operand.vmem [shape: f32[256,16], index: 8, kind: output, shape index: {}]
  %s9 = sld [smem:[#allocation0]]
  $region42: #{tpu_custom_call.1} parent=0
    _
  %s11 = ssub.s32 1, %s9
  %s12 = scalar_select 0, %s11, %s9
  // Predicated region
  $region2: #{tpu_custom_call.1} parent=0 // pred_check
    _
  $region3: #{tpu_custom_call.1} parent=0 // pred_check_branch
    %14 = sbr.rel (0) target = $region5
  $region4: #{tpu_custom_call.1} parent=0 // pred_region
    _
  $region5: #{tpu_custom_call.1} parent=0 // pred_fallthru
    _
  // Predicated region
  $region6: #{tpu_custom_call.1} parent=0 // pred_check
    _
  $region7: #{tpu_custom_call.1} parent=0 // pred_check_branch
    %16 = sbr.rel (0) target = $region9
  $region8: #{tpu_custom_call.1} parent=0 // pred_region
    _
  $region9: #{tpu_custom_call.1} parent=0 // pred_fallthru
    _
  // Predicated region
  $region10: #{tpu_custom_call.1} parent=0 // pred_check
    _
  $region11: #{tpu_custom_call.1} parent=0 // pred_check_branch
    %18 = sbr.rel (0) target = $region13
  $region12: #{tpu_custom_call.1} parent=0 // pred_region
    _
  $region13: #{tpu_custom_call.1} parent=0 // pred_fallthru
    _
  // Predicated region
  $region14: #{tpu_custom_call.1} parent=0 // pred_check
    _
  $region15: #{tpu_custom_call.1} parent=0 // pred_check_branch
    %20 = sbr.rel (0) target = $region17
  $region16: #{tpu_custom_call.1} parent=0 // pred_region
    _
  $region17: #{tpu_custom_call.1} parent=0 // pred_fallthru
    _
  // Predicated region
  $region18: #{tpu_custom_call.1} parent=0 // pred_check
    _
  $region19: #{tpu_custom_call.1} parent=0 // pred_check_branch
    %22 = sbr.rel (0) target = $region21
  $region20: #{tpu_custom_call.1} parent=0 // pred_region
    _
  $region21: #{tpu_custom_call.1} parent=0 // pred_fallthru
    _
  // Predicated region
  $region22: #{tpu_custom_call.1} parent=0 // pred_check
    _
  $region23: #{tpu_custom_call.1} parent=0 // pred_check_branch
    %24 = sbr.rel (0) target = $region25
  $region24: #{tpu_custom_call.1} parent=0 // pred_region
    _
  $region25: #{tpu_custom_call.1} parent=0 // pred_fallthru
    _
  // Predicated region
  $region26: #{tpu_custom_call.1} parent=0 // pred_check
    _
  $region27: #{tpu_custom_call.1} parent=0 // pred_check_branch
    %26 = sbr.rel (0) target = $region29
  $region28: #{tpu_custom_call.1} parent=0 // pred_region
    _
  $region29: #{tpu_custom_call.1} parent=0 // pred_fallthru
    _
  // Predicated region
  $region30: #{tpu_custom_call.1} parent=0 // pred_check
    _
  $region31: #{tpu_custom_call.1} parent=0 // pred_check_branch
    %28 = sbr.rel (0) target = $region33
  $region32: #{tpu_custom_call.1} parent=0 // pred_region
    _
  $region33: #{tpu_custom_call.1} parent=0 // pred_fallthru
    _
  %v30 = vld [vmem:[%s1] sm:$0xff]
  %v31 = vld [vmem:[%s1 + $0x8] sm:$0xff]
  %v32 = vld [vmem:[%s1 + $0x10] sm:$0xff]
  %v33 = vld [vmem:[%s1 + $0x18] sm:$0xff]
  %v34 = vld [vmem:[%s1 + $0x20] sm:$0xff]
  %v35 = vld [vmem:[%s1 + $0x28] sm:$0xff]
  %v36 = vld [vmem:[%s1 + $0x30] sm:$0xff]
  %v37 = vld [vmem:[%s1 + $0x38] sm:$0xff]
  %v38 = vld [vmem:[%s1 + $0x40] sm:$0xff]
  %v39 = vld [vmem:[%s1 + $0x48] sm:$0xff]
  %v40 = vld [vmem:[%s1 + $0x50] sm:$0xff]
  %v41 = vld [vmem:[%s1 + $0x58] sm:$0xff]
  %v42 = vld [vmem:[%s1 + $0x60] sm:$0xff]
  %v43 = vld [vmem:[%s1 + $0x68] sm:$0xff]
  %v44 = vld [vmem:[%s1 + $0x70] sm:$0xff]
  %v45 = vld [vmem:[%s1 + $0x78] sm:$0xff]
  %v46 = vld [vmem:[%s1 + $0x80] sm:$0xff]
  %v47 = vld [vmem:[%s1 + $0x88] sm:$0xff]
  %v48 = vld [vmem:[%s1 + $0x90] sm:$0xff]
  %v49 = vld [vmem:[%s1 + $0x98] sm:$0xff]
  %v50 = vld [vmem:[%s1 + $0xa0] sm:$0xff]
  %v51 = vld [vmem:[%s1 + $0xa8] sm:$0xff]
  %v52 = vld [vmem:[%s1 + $0xb0] sm:$0xff]
  %v53 = vld [vmem:[%s1 + $0xb8] sm:$0xff]
  %v54 = vld [vmem:[%s1 + $0xc0] sm:$0xff]
  %v55 = vld [vmem:[%s1 + $0xc8] sm:$0xff]
  %v56 = vld [vmem:[%s1 + $0xd0] sm:$0xff]
  %v57 = vld [vmem:[%s1 + $0xd8] sm:$0xff]
  %v58 = vld [vmem:[%s1 + $0xe0] sm:$0xff]
  %v59 = vld [vmem:[%s1 + $0xe8] sm:$0xff]
  %v60 = vld [vmem:[%s1 + $0xf0] sm:$0xff]
  %v61 = vld [vmem:[%s1 + $0xf8] sm:$0xff]
  %v62 = vld [vmem:[%s0] sm:$0xff]
  %v63 = vld [vmem:[%s0 + $0x8] sm:$0xff]
  %v64 = vld [vmem:[%s0 + $0x10] sm:$0xff]
  %v65 = vld [vmem:[%s0 + $0x18] sm:$0xff]
  %v66 = vld [vmem:[%s0 + $0x20] sm:$0xff]
  %v67 = vld [vmem:[%s0 + $0x28] sm:$0xff]
  %v68 = vld [vmem:[%s0 + $0x30] sm:$0xff]
  %v69 = vld [vmem:[%s0 + $0x38] sm:$0xff]
  %v70 = vld [vmem:[%s0 + $0x40] sm:$0xff]
  %v71 = vld [vmem:[%s0 + $0x48] sm:$0xff]
  %v72 = vld [vmem:[%s0 + $0x50] sm:$0xff]
  %v73 = vld [vmem:[%s0 + $0x58] sm:$0xff]
  %v74 = vld [vmem:[%s0 + $0x60] sm:$0xff]
  %v75 = vld [vmem:[%s0 + $0x68] sm:$0xff]
  %v76 = vld [vmem:[%s0 + $0x70] sm:$0xff]
  %v77 = vld [vmem:[%s0 + $0x78] sm:$0xff]
  %v78 = vld [vmem:[%s0 + $0x80] sm:$0xff]
  %v79 = vld [vmem:[%s0 + $0x88] sm:$0xff]
  %v80 = vld [vmem:[%s0 + $0x90] sm:$0xff]
  %v81 = vld [vmem:[%s0 + $0x98] sm:$0xff]
  %v82 = vld [vmem:[%s0 + $0xa0] sm:$0xff]
  %v83 = vld [vmem:[%s0 + $0xa8] sm:$0xff]
  %v84 = vld [vmem:[%s0 + $0xb0] sm:$0xff]
  %v85 = vld [vmem:[%s0 + $0xb8] sm:$0xff]
  %v86 = vld [vmem:[%s0 + $0xc0] sm:$0xff]
  %v87 = vld [vmem:[%s0 + $0xc8] sm:$0xff]
  %v88 = vld [vmem:[%s0 + $0xd0] sm:$0xff]
  %v89 = vld [vmem:[%s0 + $0xd8] sm:$0xff]
  %v90 = vld [vmem:[%s0 + $0xe0] sm:$0xff]
  %v91 = vld [vmem:[%s0 + $0xe8] sm:$0xff]
  %v92 = vld [vmem:[%s0 + $0xf0] sm:$0xff]
  %v93 = vld [vmem:[%s0 + $0xf8] sm:$0xff]
  %v94 = vunpack.c.l.bf16 %v62
  %v95 = vunpack.c.h.bf16 %v62
  %v96 = vunpack.c.l.bf16 %v63
  %v97 = vunpack.c.h.bf16 %v63
  %v98 = vunpack.c.l.bf16 %v64
  %v99 = vunpack.c.h.bf16 %v64
  %v100 = vunpack.c.l.bf16 %v65
  %v101 = vunpack.c.h.bf16 %v65
  %v102 = vunpack.c.l.bf16 %v66
  %v103 = vunpack.c.h.bf16 %v66
  %v104 = vunpack.c.l.bf16 %v67
  %v105 = vunpack.c.h.bf16 %v67
  %v106 = vunpack.c.l.bf16 %v68
  %v107 = vunpack.c.h.bf16 %v68
  %v108 = vunpack.c.l.bf16 %v69
  %v109 = vunpack.c.h.bf16 %v69
  %v110 = vunpack.c.l.bf16 %v70
  %v111 = vunpack.c.h.bf16 %v70
  %v112 = vunpack.c.l.bf16 %v71
  %v113 = vunpack.c.h.bf16 %v71
  %v114 = vunpack.c.l.bf16 %v72
  %v115 = vunpack.c.h.bf16 %v72
  %v116 = vunpack.c.l.bf16 %v73
  %v117 = vunpack.c.h.bf16 %v73
  %v118 = vunpack.c.l.bf16 %v74
  %v119 = vunpack.c.h.bf16 %v74
  %v120 = vunpack.c.l.bf16 %v75
  %v121 = vunpack.c.h.bf16 %v75
  %v122 = vunpack.c.l.bf16 %v76
  %v123 = vunpack.c.h.bf16 %v76
  %v124 = vunpack.c.l.bf16 %v77
  %v125 = vunpack.c.h.bf16 %v77
  %v126 = vunpack.c.l.bf16 %v78
  %v127 = vunpack.c.h.bf16 %v78
  %v128 = vunpack.c.l.bf16 %v79
  %v129 = vunpack.c.h.bf16 %v79
  %v130 = vunpack.c.l.bf16 %v80
  %v131 = vunpack.c.h.bf16 %v80
  %v132 = vunpack.c.l.bf16 %v81
  %v133 = vunpack.c.h.bf16 %v81
  %v134 = vunpack.c.l.bf16 %v82
  %v135 = vunpack.c.h.bf16 %v82
  %v136 = vunpack.c.l.bf16 %v83
  %v137 = vunpack.c.h.bf16 %v83
  %v138 = vunpack.c.l.bf16 %v84
  %v139 = vunpack.c.h.bf16 %v84
  %v140 = vunpack.c.l.bf16 %v85
  %v141 = vunpack.c.h.bf16 %v85
  %v142 = vunpack.c.l.bf16 %v86
  %v143 = vunpack.c.h.bf16 %v86
  %v144 = vunpack.c.l.bf16 %v87
  %v145 = vunpack.c.h.bf16 %v87
  %v146 = vunpack.c.l.bf16 %v88
  %v147 = vunpack.c.h.bf16 %v88
  %v148 = vunpack.c.l.bf16 %v89
  %v149 = vunpack.c.h.bf16 %v89
  %v150 = vunpack.c.l.bf16 %v90
  %v151 = vunpack.c.h.bf16 %v90
  %v152 = vunpack.c.l.bf16 %v91
  %v153 = vunpack.c.h.bf16 %v91
  %v154 = vunpack.c.l.bf16 %v92
  %v155 = vunpack.c.h.bf16 %v92
  %v156 = vunpack.c.l.bf16 %v93
  %v157 = vunpack.c.h.bf16 %v93
  %159 = vset.pattern.permute.xlu0 0
  %160 = vperm.xlu0 %159, %v30
  %v161 = vpop.permute.xlu0 %160
  %164 = vset.pattern.permute.xlu0 0
  %165 = vperm.xlu0 %164, %v31
  %v166 = vpop.permute.xlu0 %165
  %169 = vset.pattern.permute.xlu0 0
  %170 = vperm.xlu0 %169, %v32
  %v171 = vpop.permute.xlu0 %170
  %174 = vset.pattern.permute.xlu0 0
  %175 = vperm.xlu0 %174, %v33
  %v176 = vpop.permute.xlu0 %175
  %179 = vset.pattern.permute.xlu0 0
  %180 = vperm.xlu0 %179, %v34
  %v181 = vpop.permute.xlu0 %180
  %184 = vset.pattern.permute.xlu0 0
  %185 = vperm.xlu0 %184, %v35
  %v186 = vpop.permute.xlu0 %185
  %189 = vset.pattern.permute.xlu0 0
  %190 = vperm.xlu0 %189, %v36
  %v191 = vpop.permute.xlu0 %190
  %194 = vset.pattern.permute.xlu0 0
  %195 = vperm.xlu0 %194, %v37
  %v196 = vpop.permute.xlu0 %195
  %199 = vset.pattern.permute.xlu0 0
  %200 = vperm.xlu0 %199, %v38
  %v201 = vpop.permute.xlu0 %200
  %204 = vset.pattern.permute.xlu0 0
  %205 = vperm.xlu0 %204, %v39
  %v206 = vpop.permute.xlu0 %205
  %209 = vset.pattern.permute.xlu0 0
  %210 = vperm.xlu0 %209, %v40
  %v211 = vpop.permute.xlu0 %210
  %214 = vset.pattern.permute.xlu0 0
  %215 = vperm.xlu0 %214, %v41
  %v216 = vpop.permute.xlu0 %215
  %219 = vset.pattern.permute.xlu0 0
  %220 = vperm.xlu0 %219, %v42
  %v221 = vpop.permute.xlu0 %220
  %224 = vset.pattern.permute.xlu0 0
  %225 = vperm.xlu0 %224, %v43
  %v226 = vpop.permute.xlu0 %225
  %229 = vset.pattern.permute.xlu0 0
  %230 = vperm.xlu0 %229, %v44
  %v231 = vpop.permute.xlu0 %230
  %234 = vset.pattern.permute.xlu0 0
  %235 = vperm.xlu0 %234, %v45
  %v236 = vpop.permute.xlu0 %235
  %239 = vset.pattern.permute.xlu0 0
  %240 = vperm.xlu0 %239, %v46
  %v241 = vpop.permute.xlu0 %240
  %244 = vset.pattern.permute.xlu0 0
  %245 = vperm.xlu0 %244, %v47
  %v246 = vpop.permute.xlu0 %245
  %249 = vset.pattern.permute.xlu0 0
  %250 = vperm.xlu0 %249, %v48
  %v251 = vpop.permute.xlu0 %250
  %254 = vset.pattern.permute.xlu0 0
  %255 = vperm.xlu0 %254, %v49
  %v256 = vpop.permute.xlu0 %255
  %259 = vset.pattern.permute.xlu0 0
  %260 = vperm.xlu0 %259, %v50
  %v261 = vpop.permute.xlu0 %260
  %264 = vset.pattern.permute.xlu0 0
  %265 = vperm.xlu0 %264, %v51
  %v266 = vpop.permute.xlu0 %265
  %269 = vset.pattern.permute.xlu0 0
  %270 = vperm.xlu0 %269, %v52
  %v271 = vpop.permute.xlu0 %270
  %274 = vset.pattern.permute.xlu0 0
  %275 = vperm.xlu0 %274, %v53
  %v276 = vpop.permute.xlu0 %275
  %279 = vset.pattern.permute.xlu0 0
  %280 = vperm.xlu0 %279, %v54
  %v281 = vpop.permute.xlu0 %280
  %284 = vset.pattern.permute.xlu0 0
  %285 = vperm.xlu0 %284, %v55
  %v286 = vpop.permute.xlu0 %285
  %289 = vset.pattern.permute.xlu0 0
  %290 = vperm.xlu0 %289, %v56
  %v291 = vpop.permute.xlu0 %290
  %294 = vset.pattern.permute.xlu0 0
  %295 = vperm.xlu0 %294, %v57
  %v296 = vpop.permute.xlu0 %295
  %299 = vset.pattern.permute.xlu0 0
  %300 = vperm.xlu0 %299, %v58
  %v301 = vpop.permute.xlu0 %300
  %304 = vset.pattern.permute.xlu0 0
  %305 = vperm.xlu0 %304, %v59
  %v306 = vpop.permute.xlu0 %305
  %309 = vset.pattern.permute.xlu0 0
  %310 = vperm.xlu0 %309, %v60
  %v311 = vpop.permute.xlu0 %310
  %314 = vset.pattern.permute.xlu0 0
  %315 = vperm.xlu0 %314, %v61
  %v316 = vpop.permute.xlu0 %315
  %v318 = vmul.f32 %v161, %v94
  %v319 = vmul.f32 %v161, %v95
  %v320 = vmul.f32 %v166, %v96
  %v321 = vmul.f32 %v166, %v97
  %v322 = vmul.f32 %v171, %v98
  %v323 = vmul.f32 %v171, %v99
  %v324 = vmul.f32 %v176, %v100
  %v325 = vmul.f32 %v176, %v101
  %v326 = vmul.f32 %v181, %v102
  %v327 = vmul.f32 %v181, %v103
  %v328 = vmul.f32 %v186, %v104
  %v329 = vmul.f32 %v186, %v105
  %v330 = vmul.f32 %v191, %v106
  %v331 = vmul.f32 %v191, %v107
  %v332 = vmul.f32 %v196, %v108
  %v333 = vmul.f32 %v196, %v109
  %v334 = vmul.f32 %v201, %v110
  %v335 = vmul.f32 %v201, %v111
  %v336 = vmul.f32 %v206, %v112
  %v337 = vmul.f32 %v206, %v113
  %v338 = vmul.f32 %v211, %v114
  %v339 = vmul.f32 %v211, %v115
  %v340 = vmul.f32 %v216, %v116
  %v341 = vmul.f32 %v216, %v117
  %v342 = vmul.f32 %v221, %v118
  %v343 = vmul.f32 %v221, %v119
  %v344 = vmul.f32 %v226, %v120
  %v345 = vmul.f32 %v226, %v121
  %v346 = vmul.f32 %v231, %v122
  %v347 = vmul.f32 %v231, %v123
  %v348 = vmul.f32 %v236, %v124
  %v349 = vmul.f32 %v236, %v125
  %v350 = vmul.f32 %v241, %v126
  %v351 = vmul.f32 %v241, %v127
  %v352 = vmul.f32 %v246, %v128
  %v353 = vmul.f32 %v246, %v129
  %v354 = vmul.f32 %v251, %v130
  %v355 = vmul.f32 %v251, %v131
  %v356 = vmul.f32 %v256, %v132
  %v357 = vmul.f32 %v256, %v133
  %v358 = vmul.f32 %v261, %v134
  %v359 = vmul.f32 %v261, %v135
  %v360 = vmul.f32 %v266, %v136
  %v361 = vmul.f32 %v266, %v137
  %v362 = vmul.f32 %v271, %v138
  %v363 = vmul.f32 %v271, %v139
  %v364 = vmul.f32 %v276, %v140
  %v365 = vmul.f32 %v276, %v141
  %v366 = vmul.f32 %v281, %v142
  %v367 = vmul.f32 %v281, %v143
  %v368 = vmul.f32 %v286, %v144
  %v369 = vmul.f32 %v286, %v145
  %v370 = vmul.f32 %v291, %v146
  %v371 = vmul.f32 %v291, %v147
  %v372 = vmul.f32 %v296, %v148
  %v373 = vmul.f32 %v296, %v149
  %v374 = vmul.f32 %v301, %v150
  %v375 = vmul.f32 %v301, %v151
  %v376 = vmul.f32 %v306, %v152
  %v377 = vmul.f32 %v306, %v153
  %v378 = vmul.f32 %v311, %v154
  %v379 = vmul.f32 %v311, %v155
  %v380 = vmul.f32 %v316, %v156
  %v381 = vmul.f32 %v316, %v157
  %v382 = vld [vmem:[%s2] sm:$0x3]
  %v384 = vlaneseq
  %v385 = vshrl.u32 %v384, 7
  %v386 = vsub.s32 0, %v385
  %v387 = vrot.slane %v382, %v386
  %v388 = vlaneseq
  %v389 = vshrl.u32 %v388, 7
  %v390 = vsub.s32 1, %v389
  %v391 = vrot.slane %v382, %v390
  %v394 = vmul.f32 %v318, %v387
  %v395 = vmul.f32 %v319, %v391
  %v396 = vmul.f32 %v320, %v387
  %v397 = vmul.f32 %v321, %v391
  %v398 = vmul.f32 %v322, %v387
  %v399 = vmul.f32 %v323, %v391
  %v400 = vmul.f32 %v324, %v387
  %v401 = vmul.f32 %v325, %v391
  %v402 = vmul.f32 %v326, %v387
  %v403 = vmul.f32 %v327, %v391
  %v404 = vmul.f32 %v328, %v387
  %v405 = vmul.f32 %v329, %v391
  %v406 = vmul.f32 %v330, %v387
  %v407 = vmul.f32 %v331, %v391
  %v408 = vmul.f32 %v332, %v387
  %v409 = vmul.f32 %v333, %v391
  %v410 = vmul.f32 %v334, %v387
  %v411 = vmul.f32 %v335, %v391
  %v412 = vmul.f32 %v336, %v387
  %v413 = vmul.f32 %v337, %v391
  %v414 = vmul.f32 %v338, %v387
  %v415 = vmul.f32 %v339, %v391
  %v416 = vmul.f32 %v340, %v387
  %v417 = vmul.f32 %v341, %v391
  %v418 = vmul.f32 %v342, %v387
  %v419 = vmul.f32 %v343, %v391
  %v420 = vmul.f32 %v344, %v387
  %v421 = vmul.f32 %v345, %v391
  %v422 = vmul.f32 %v346, %v387
  %v423 = vmul.f32 %v347, %v391
  %v424 = vmul.f32 %v348, %v387
  %v425 = vmul.f32 %v349, %v391
  %v426 = vmul.f32 %v350, %v387
  %v427 = vmul.f32 %v351, %v391
  %v428 = vmul.f32 %v352, %v387
  %v429 = vmul.f32 %v353, %v391
  %v430 = vmul.f32 %v354, %v387
  %v431 = vmul.f32 %v355, %v391
  %v432 = vmul.f32 %v356, %v387
  %v433 = vmul.f32 %v357, %v391
  %v434 = vmul.f32 %v358, %v387
  %v435 = vmul.f32 %v359, %v391
  %v436 = vmul.f32 %v360, %v387
  %v437 = vmul.f32 %v361, %v391
  %v438 = vmul.f32 %v362, %v387
  %v439 = vmul.f32 %v363, %v391
  %v440 = vmul.f32 %v364, %v387
  %v441 = vmul.f32 %v365, %v391
  %v442 = vmul.f32 %v366, %v387
  %v443 = vmul.f32 %v367, %v391
  %v444 = vmul.f32 %v368, %v387
  %v445 = vmul.f32 %v369, %v391
  %v446 = vmul.f32 %v370, %v387
  %v447 = vmul.f32 %v371, %v391
  %v448 = vmul.f32 %v372, %v387
  %v449 = vmul.f32 %v373, %v391
  %v450 = vmul.f32 %v374, %v387
  %v451 = vmul.f32 %v375, %v391
  %v452 = vmul.f32 %v376, %v387
  %v453 = vmul.f32 %v377, %v391
  %v454 = vmul.f32 %v378, %v387
  %v455 = vmul.f32 %v379, %v391
  %v456 = vmul.f32 %v380, %v387
  %v457 = vmul.f32 %v381, %v391
  %v458 = vpack.c.bf16 %v396, %v394
  %v459 = vpack.c.bf16 %v397, %v395
  %v460 = vpack.c.bf16 %v400, %v398
  %v461 = vpack.c.bf16 %v401, %v399
  %v462 = vpack.c.bf16 %v404, %v402
  %v463 = vpack.c.bf16 %v405, %v403
  %v464 = vpack.c.bf16 %v408, %v406
  %v465 = vpack.c.bf16 %v409, %v407
  %v466 = vpack.c.bf16 %v412, %v410
  %v467 = vpack.c.bf16 %v413, %v411
  %v468 = vpack.c.bf16 %v416, %v414
  %v469 = vpack.c.bf16 %v417, %v415
  %v470 = vpack.c.bf16 %v420, %v418
  %v471 = vpack.c.bf16 %v421, %v419
  %v472 = vpack.c.bf16 %v424, %v422
  %v473 = vpack.c.bf16 %v425, %v423
  %v474 = vpack.c.bf16 %v428, %v426
  %v475 = vpack.c.bf16 %v429, %v427
  %v476 = vpack.c.bf16 %v432, %v430
  %v477 = vpack.c.bf16 %v433, %v431
  %v478 = vpack.c.bf16 %v436, %v434
  %v479 = vpack.c.bf16 %v437, %v435
  %v480 = vpack.c.bf16 %v440, %v438
  %v481 = vpack.c.bf16 %v441, %v439
  %v482 = vpack.c.bf16 %v444, %v442
  %v483 = vpack.c.bf16 %v445, %v443
  %v484 = vpack.c.bf16 %v448, %v446
  %v485 = vpack.c.bf16 %v449, %v447
  %v486 = vpack.c.bf16 %v452, %v450
  %v487 = vpack.c.bf16 %v453, %v451
  %v488 = vpack.c.bf16 %v456, %v454
  %v489 = vpack.c.bf16 %v457, %v455
  %v490 = vld [vmem:[%s3] sm:$0xf]
  %v491 = vld [vmem:[%s3 + $0x4] sm:$0xf]
  %v492 = vld [vmem:[%s3 + $0x8] sm:$0xf]
  %v493 = vld [vmem:[%s3 + $0xc] sm:$0xf]
  %v494 = vld [vmem:[%s3 + $0x10] sm:$0xf]
  %v495 = vld [vmem:[%s3 + $0x14] sm:$0xf]
  %v496 = vld [vmem:[%s3 + $0x18] sm:$0xf]
  %v497 = vld [vmem:[%s3 + $0x1c] sm:$0xf]
  %v498 = vld [vmem:[%s3 + $0x20] sm:$0xf]
  %v499 = vld [vmem:[%s3 + $0x24] sm:$0xf]
  %v500 = vld [vmem:[%s3 + $0x28] sm:$0xf]
  %v501 = vld [vmem:[%s3 + $0x2c] sm:$0xf]
  %v502 = vld [vmem:[%s3 + $0x30] sm:$0xf]
  %v503 = vld [vmem:[%s3 + $0x34] sm:$0xf]
  %v504 = vld [vmem:[%s3 + $0x38] sm:$0xf]
  %v505 = vld [vmem:[%s3 + $0x3c] sm:$0xf]
  %v506 = vld [vmem:[%s3 + $0x40] sm:$0xf]
  %v507 = vld [vmem:[%s3 + $0x44] sm:$0xf]
  %v508 = vld [vmem:[%s3 + $0x48] sm:$0xf]
  %v509 = vld [vmem:[%s3 + $0x4c] sm:$0xf]
  %v510 = vld [vmem:[%s3 + $0x50] sm:$0xf]
  %v511 = vld [vmem:[%s3 + $0x54] sm:$0xf]
  %v512 = vld [vmem:[%s3 + $0x58] sm:$0xf]
  %v513 = vld [vmem:[%s3 + $0x5c] sm:$0xf]
  %v514 = vld [vmem:[%s3 + $0x60] sm:$0xf]
  %v515 = vld [vmem:[%s3 + $0x64] sm:$0xf]
  %v516 = vld [vmem:[%s3 + $0x68] sm:$0xf]
  %v517 = vld [vmem:[%s3 + $0x6c] sm:$0xf]
  %v518 = vld [vmem:[%s3 + $0x70] sm:$0xf]
  %v519 = vld [vmem:[%s3 + $0x74] sm:$0xf]
  %v520 = vld [vmem:[%s3 + $0x78] sm:$0xf]
  %v521 = vld [vmem:[%s3 + $0x7c] sm:$0xf]
  %v522 = vld [vmem:[%s4] sm:$0xf]
  %v523 = vld [vmem:[%s4 + $0x4] sm:$0xf]
  %v556 = vunpack.c.l.b16 %v490
  %v557 = vunpack.c.l.b16 %v491
  %v558 = vunpack.c.l.b16 %v492
  %v559 = vunpack.c.l.b16 %v493
  %v560 = vunpack.c.l.b16 %v494
  %v561 = vunpack.c.l.b16 %v495
  %v562 = vunpack.c.l.b16 %v496
  %v563 = vunpack.c.l.b16 %v497
  %v564 = vunpack.c.l.b16 %v498
  %v565 = vunpack.c.l.b16 %v499
  %v566 = vunpack.c.l.b16 %v500
  %v567 = vunpack.c.l.b16 %v501
  %v568 = vunpack.c.l.b16 %v502
  %v569 = vunpack.c.l.b16 %v503
  %v570 = vunpack.c.l.b16 %v504
  %v571 = vunpack.c.l.b16 %v505
  %v572 = vunpack.c.l.b16 %v506
  %v573 = vunpack.c.l.b16 %v507
  %v574 = vunpack.c.l.b16 %v508
  %v575 = vunpack.c.l.b16 %v509
  %v576 = vunpack.c.l.b16 %v510
  %v577 = vunpack.c.l.b16 %v511
  %v578 = vunpack.c.l.b16 %v512
  %v579 = vunpack.c.l.b16 %v513
  %v580 = vunpack.c.l.b16 %v514
  %v581 = vunpack.c.l.b16 %v515
  %v582 = vunpack.c.l.b16 %v516
  %v583 = vunpack.c.l.b16 %v517
  %v584 = vunpack.c.l.b16 %v518
  %v585 = vunpack.c.l.b16 %v519
  %v586 = vunpack.c.l.b16 %v520
  %v587 = vunpack.c.l.b16 %v521
  %v588 = vpack.c.b16 %v557, %v556
  %v589 = vpack.c.b16 %v559, %v558
  %v590 = vpack.c.b16 %v561, %v560
  %v591 = vpack.c.b16 %v563, %v562
  %v592 = vpack.c.b16 %v565, %v564
  %v593 = vpack.c.b16 %v567, %v566
  %v594 = vpack.c.b16 %v569, %v568
  %v595 = vpack.c.b16 %v571, %v570
  %v596 = vpack.c.b16 %v573, %v572
  %v597 = vpack.c.b16 %v575, %v574
  %v598 = vpack.c.b16 %v577, %v576
  %v599 = vpack.c.b16 %v579, %v578
  %v600 = vpack.c.b16 %v581, %v580
  %v601 = vpack.c.b16 %v583, %v582
  %v602 = vpack.c.b16 %v585, %v584
  %v603 = vpack.c.b16 %v587, %v586
  %v606 = vunpack.c.l.b16 %v522
  %v607 = vunpack.c.l.b16 %v523
  %v608 = vpack.c.b16 %v607, %v606
  %vm610 = vcmask 130048
  %v612 = vsel %vm610, %v588, 0
  %v615 = vsel %vm610, %v589, 0
  %v618 = vsel %vm610, %v590, 0
  %v621 = vsel %vm610, %v591, 0
  %v624 = vsel %vm610, %v592, 0
  %v627 = vsel %vm610, %v593, 0
  %v630 = vsel %vm610, %v594, 0
  %v633 = vsel %vm610, %v595, 0
  %v636 = vsel %vm610, %v596, 0
  %v639 = vsel %vm610, %v597, 0
  %v642 = vsel %vm610, %v598, 0
  %v645 = vsel %vm610, %v599, 0
  %v648 = vsel %vm610, %v600, 0
  %v651 = vsel %vm610, %v601, 0
  %v654 = vsel %vm610, %v602, 0
  %v657 = vsel %vm610, %v603, 0
  %659 = vmatprep.subr.bf16.mxu0 0
  %660 = vmatpush1.bf16.msra.mxu0 0
  %661 = vmatprep.subr.bf16.mxu0 0
  %662 = vmatpush1.bf16.msra.mxu0 0
  %663 = vmatprep.subr.bf16.mxu0 0
  %664 = vmatpush1.bf16.msra.mxu0 0
  %665 = vmatprep.subr.bf16.mxu0 0
  %666 = vmatpush1.bf16.msra.mxu0 0
  %667 = vmatprep.subr.bf16.mxu0 0
  %668 = vmatpush1.bf16.msra.mxu0 0
  %669 = vmatprep.subr.bf16.mxu0 0
  %670 = vmatpush1.bf16.msra.mxu0 0
  %671 = vmatprep.subr.bf16.mxu0 0
  %672 = vmatpush1.bf16.msra.mxu0 0
  %673 = vmatprep.subr.bf16.mxu0 0
  %674 = vmatpush1.bf16.msra.mxu0 %v608
  %675 = vmatprep.subr.bf16.mxu0 0
  %676 = vmatpush2.bf16.msra.mxu0 0
  %677 = vmatprep.subr.bf16.mxu0 0
  %678 = vmatpush2.bf16.msra.mxu0 0
  %679 = vmatprep.subr.bf16.mxu0 0
  %680 = vmatpush2.bf16.msra.mxu0 0
  %681 = vmatprep.subr.bf16.mxu0 0
  %682 = vmatpush2.bf16.msra.mxu0 0
  %683 = vmatprep.subr.bf16.mxu0 0
  %684 = vmatpush2.bf16.msra.mxu0 0
  %685 = vmatprep.subr.bf16.mxu0 0
  %686 = vmatpush2.bf16.msra.mxu0 0
  %687 = vmatprep.subr.bf16.mxu0 0
  %688 = vmatpush2.bf16.msra.mxu0 0
  %689 = vmatprep.subr.bf16.mxu0 0
  %690 = vmatpush2.bf16.msra.mxu0 0
  %691 = vmatprep.mubr.bf16.mxu0 0
  %692 = vmatmul.mubr.bf16.gmra.mxu0 %v612
  %v693 = vpop.f32.mrf.mxu0
  %v694 = vadd.f32 0.0, %v693
  %v695 = vpop.f32.mrf.mxu0
  %v696 = vpop.f32.mrf.mxu0
  %v697 = vadd.f32 0.0, %v696
  %v698 = vpop.f32.mrf.mxu0
  %699 = vmatprep.mubr.bf16.mxu0 0
  %700 = vmatmul.mubr.bf16.gmra.mxu0 %v615
  %v701 = vpop.f32.mrf.mxu0
  %v702 = vadd.f32 0.0, %v701
  %v703 = vpop.f32.mrf.mxu0
  %v704 = vpop.f32.mrf.mxu0
  %v705 = vadd.f32 0.0, %v704
  %v706 = vpop.f32.mrf.mxu0
  %707 = vmatprep.mubr.bf16.mxu0 0
  %708 = vmatmul.mubr.bf16.gmra.mxu0 %v618
  %v709 = vpop.f32.mrf.mxu0
  %v710 = vadd.f32 0.0, %v709
  %v711 = vpop.f32.mrf.mxu0
  %v712 = vpop.f32.mrf.mxu0
  %v713 = vadd.f32 0.0, %v712
  %v714 = vpop.f32.mrf.mxu0
  %715 = vmatprep.mubr.bf16.mxu0 0
  %716 = vmatmul.mubr.bf16.gmra.mxu0 %v621
  %v717 = vpop.f32.mrf.mxu0
  %v718 = vadd.f32 0.0, %v717
  %v719 = vpop.f32.mrf.mxu0
  %v720 = vpop.f32.mrf.mxu0
  %v721 = vadd.f32 0.0, %v720
  %v722 = vpop.f32.mrf.mxu0
  %723 = vmatprep.mubr.bf16.mxu0 0
  %724 = vmatmul.mubr.bf16.gmra.mxu0 %v624
  %v725 = vpop.f32.mrf.mxu0
  %v726 = vadd.f32 0.0, %v725
  %v727 = vpop.f32.mrf.mxu0
  %v728 = vpop.f32.mrf.mxu0
  %v729 = vadd.f32 0.0, %v728
  %v730 = vpop.f32.mrf.mxu0
  %731 = vmatprep.mubr.bf16.mxu0 0
  %732 = vmatmul.mubr.bf16.gmra.mxu0 %v627
  %v733 = vpop.f32.mrf.mxu0
  %v734 = vadd.f32 0.0, %v733
  %v735 = vpop.f32.mrf.mxu0
  %v736 = vpop.f32.mrf.mxu0
  %v737 = vadd.f32 0.0, %v736
  %v738 = vpop.f32.mrf.mxu0
  %739 = vmatprep.mubr.bf16.mxu0 0
  %740 = vmatmul.mubr.bf16.gmra.mxu0 %v630
  %v741 = vpop.f32.mrf.mxu0
  %v742 = vadd.f32 0.0, %v741
  %v743 = vpop.f32.mrf.mxu0
  %v744 = vpop.f32.mrf.mxu0
  %v745 = vadd.f32 0.0, %v744
  %v746 = vpop.f32.mrf.mxu0
  %747 = vmatprep.mubr.bf16.mxu0 0
  %748 = vmatmul.mubr.bf16.gmra.mxu0 %v633
  %v749 = vpop.f32.mrf.mxu0
  %v750 = vadd.f32 0.0, %v749
  %v751 = vpop.f32.mrf.mxu0
  %v752 = vpop.f32.mrf.mxu0
  %v753 = vadd.f32 0.0, %v752
  %v754 = vpop.f32.mrf.mxu0
  %755 = vmatprep.mubr.bf16.mxu0 0
  %756 = vmatmul.mubr.bf16.gmra.mxu0 %v636
  %v757 = vpop.f32.mrf.mxu0
  %v758 = vadd.f32 0.0, %v757
  %v759 = vpop.f32.mrf.mxu0
  %v760 = vpop.f32.mrf.mxu0
  %v761 = vadd.f32 0.0, %v760
  %v762 = vpop.f32.mrf.mxu0
  %763 = vmatprep.mubr.bf16.mxu0 0
  %764 = vmatmul.mubr.bf16.gmra.mxu0 %v639
  %v765 = vpop.f32.mrf.mxu0
  %v766 = vadd.f32 0.0, %v765
  %v767 = vpop.f32.mrf.mxu0
  %v768 = vpop.f32.mrf.mxu0
  %v769 = vadd.f32 0.0, %v768
  %v770 = vpop.f32.mrf.mxu0
  %771 = vmatprep.mubr.bf16.mxu0 0
  %772 = vmatmul.mubr.bf16.gmra.mxu0 %v642
  %v773 = vpop.f32.mrf.mxu0
  %v774 = vadd.f32 0.0, %v773
  %v775 = vpop.f32.mrf.mxu0
  %v776 = vpop.f32.mrf.mxu0
  %v777 = vadd.f32 0.0, %v776
  %v778 = vpop.f32.mrf.mxu0
  %779 = vmatprep.mubr.bf16.mxu0 0
  %780 = vmatmul.mubr.bf16.gmra.mxu0 %v645
  %v781 = vpop.f32.mrf.mxu0
  %v782 = vadd.f32 0.0, %v781
  %v783 = vpop.f32.mrf.mxu0
  %v784 = vpop.f32.mrf.mxu0
  %v785 = vadd.f32 0.0, %v784
  %v786 = vpop.f32.mrf.mxu0
  %787 = vmatprep.mubr.bf16.mxu0 0
  %788 = vmatmul.mubr.bf16.gmra.mxu0 %v648
  %v789 = vpop.f32.mrf.mxu0
  %v790 = vadd.f32 0.0, %v789
  %v791 = vpop.f32.mrf.mxu0
  %v792 = vpop.f32.mrf.mxu0
  %v793 = vadd.f32 0.0, %v792
  %v794 = vpop.f32.mrf.mxu0
  %795 = vmatprep.mubr.bf16.mxu0 0
  %796 = vmatmul.mubr.bf16.gmra.mxu0 %v651
  %v797 = vpop.f32.mrf.mxu0
  %v798 = vadd.f32 0.0, %v797
  %v799 = vpop.f32.mrf.mxu0
  %v800 = vpop.f32.mrf.mxu0
  %v801 = vadd.f32 0.0, %v800
  %v802 = vpop.f32.mrf.mxu0
  %803 = vmatprep.mubr.bf16.mxu0 0
  %804 = vmatmul.mubr.bf16.gmra.mxu0 %v654
  %v805 = vpop.f32.mrf.mxu0
  %v806 = vadd.f32 0.0, %v805
  %v807 = vpop.f32.mrf.mxu0
  %v808 = vpop.f32.mrf.mxu0
  %v809 = vadd.f32 0.0, %v808
  %v810 = vpop.f32.mrf.mxu0
  %811 = vmatprep.mubr.bf16.mxu0 0
  %812 = vmatmul.mubr.bf16.gmra.mxu0 %v657
  %v813 = vpop.f32.mrf.mxu0
  %v814 = vadd.f32 0.0, %v813
  %v815 = vpop.f32.mrf.mxu0
  %v816 = vpop.f32.mrf.mxu0
  %v817 = vadd.f32 0.0, %v816
  %v818 = vpop.f32.mrf.mxu0
  %819 = vdwg.mxu0
  %v820 = vpack.c.bf16 %v697, %v694
  %v821 = vpack.c.bf16 %v705, %v702
  %v822 = vpack.c.bf16 %v713, %v710
  %v823 = vpack.c.bf16 %v721, %v718
  %v824 = vpack.c.bf16 %v729, %v726
  %v825 = vpack.c.bf16 %v737, %v734
  %v826 = vpack.c.bf16 %v745, %v742
  %v827 = vpack.c.bf16 %v753, %v750
  %v828 = vpack.c.bf16 %v761, %v758
  %v829 = vpack.c.bf16 %v769, %v766
  %v830 = vpack.c.bf16 %v777, %v774
  %v831 = vpack.c.bf16 %v785, %v782
  %v832 = vpack.c.bf16 %v793, %v790
  %v833 = vpack.c.bf16 %v801, %v798
  %v834 = vpack.c.bf16 %v809, %v806
  %v835 = vpack.c.bf16 %v817, %v814
  %v836 = vld [vmem:[%s5] sm:$0x1]
  %v838 = vlaneseq
  %v839 = vshrl.u32 %v838, 7
  %v840 = vsub.s32 0, %v839
  %v841 = vrot.slane %v836, %v840
  %843 = vmatprep.subr.bf16.mxu0 0
  %844 = vmatpush1.bf16.msra.mxu0 %v827
  %845 = vmatprep.subr.bf16.mxu0 0
  %846 = vmatpush1.bf16.msra.mxu0 %v826
  %847 = vmatprep.subr.bf16.mxu0 0
  %848 = vmatpush1.bf16.msra.mxu0 %v825
  %849 = vmatprep.subr.bf16.mxu0 0
  %850 = vmatpush1.bf16.msra.mxu0 %v824
  %851 = vmatprep.subr.bf16.mxu0 0
  %852 = vmatpush1.bf16.msra.mxu0 %v823
  %853 = vmatprep.subr.bf16.mxu0 0
  %854 = vmatpush1.bf16.msra.mxu0 %v822
  %855 = vmatprep.subr.bf16.mxu0 0
  %856 = vmatpush1.bf16.msra.mxu0 %v821
  %857 = vmatprep.subr.bf16.mxu0 0
  %858 = vmatpush1.bf16.msra.mxu0 %v820
  %859 = vmatprep.subr.bf16.mxu0 0
  %860 = vmatpush2.bf16.msra.mxu0 %v835
  %861 = vmatprep.subr.bf16.mxu0 0
  %862 = vmatpush2.bf16.msra.mxu0 %v834
  %863 = vmatprep.subr.bf16.mxu0 0
  %864 = vmatpush2.bf16.msra.mxu0 %v833
  %865 = vmatprep.subr.bf16.mxu0 0
  %866 = vmatpush2.bf16.msra.mxu0 %v832
  %867 = vmatprep.subr.bf16.mxu0 0
  %868 = vmatpush2.bf16.msra.mxu0 %v831
  %869 = vmatprep.subr.bf16.mxu0 0
  %870 = vmatpush2.bf16.msra.mxu0 %v830
  %871 = vmatprep.subr.bf16.mxu0 0
  %872 = vmatpush2.bf16.msra.mxu0 %v829
  %873 = vmatprep.subr.bf16.mxu0 0
  %874 = vmatpush2.bf16.msra.mxu0 %v828
  %875 = vmatprep.mubr.bf16.mxu0 %v459
  %876 = vmatmul.mubr.bf16.gmra.mxu0 %v458
  %v877 = vpop.f32.mrf.mxu0
  %v878 = vadd.f32 %v841, %v877
  %v879 = vpop.f32.mrf.mxu0
  %v880 = vpop.f32.mrf.mxu0
  %v881 = vadd.f32 %v841, %v880
  %v882 = vpop.f32.mrf.mxu0
  %883 = vmatprep.mubr.bf16.mxu0 %v461
  %884 = vmatmul.mubr.bf16.gmra.mxu0 %v460
  %v885 = vpop.f32.mrf.mxu0
  %v886 = vadd.f32 %v841, %v885
  %v887 = vpop.f32.mrf.mxu0
  %v888 = vpop.f32.mrf.mxu0
  %v889 = vadd.f32 %v841, %v888
  %v890 = vpop.f32.mrf.mxu0
  %891 = vmatprep.mubr.bf16.mxu0 %v463
  %892 = vmatmul.mubr.bf16.gmra.mxu0 %v462
  %v893 = vpop.f32.mrf.mxu0
  %v894 = vadd.f32 %v841, %v893
  %v895 = vpop.f32.mrf.mxu0
  %v896 = vpop.f32.mrf.mxu0
  %v897 = vadd.f32 %v841, %v896
  %v898 = vpop.f32.mrf.mxu0
  %899 = vmatprep.mubr.bf16.mxu0 %v465
  %900 = vmatmul.mubr.bf16.gmra.mxu0 %v464
  %v901 = vpop.f32.mrf.mxu0
  %v902 = vadd.f32 %v841, %v901
  %v903 = vpop.f32.mrf.mxu0
  %v904 = vpop.f32.mrf.mxu0
  %v905 = vadd.f32 %v841, %v904
  %v906 = vpop.f32.mrf.mxu0
  %907 = vmatprep.mubr.bf16.mxu0 %v467
  %908 = vmatmul.mubr.bf16.gmra.mxu0 %v466
  %v909 = vpop.f32.mrf.mxu0
  %v910 = vadd.f32 %v841, %v909
  %v911 = vpop.f32.mrf.mxu0
  %v912 = vpop.f32.mrf.mxu0
  %v913 = vadd.f32 %v841, %v912
  %v914 = vpop.f32.mrf.mxu0
  %915 = vmatprep.mubr.bf16.mxu0 %v469
  %916 = vmatmul.mubr.bf16.gmra.mxu0 %v468
  %v917 = vpop.f32.mrf.mxu0
  %v918 = vadd.f32 %v841, %v917
  %v919 = vpop.f32.mrf.mxu0
  %v920 = vpop.f32.mrf.mxu0
  %v921 = vadd.f32 %v841, %v920
  %v922 = vpop.f32.mrf.mxu0
  %923 = vmatprep.mubr.bf16.mxu0 %v471
  %924 = vmatmul.mubr.bf16.gmra.mxu0 %v470
  %v925 = vpop.f32.mrf.mxu0
  %v926 = vadd.f32 %v841, %v925
  %v927 = vpop.f32.mrf.mxu0
  %v928 = vpop.f32.mrf.mxu0
  %v929 = vadd.f32 %v841, %v928
  %v930 = vpop.f32.mrf.mxu0
  %931 = vmatprep.mubr.bf16.mxu0 %v473
  %932 = vmatmul.mubr.bf16.gmra.mxu0 %v472
  %v933 = vpop.f32.mrf.mxu0
  %v934 = vadd.f32 %v841, %v933
  %v935 = vpop.f32.mrf.mxu0
  %v936 = vpop.f32.mrf.mxu0
  %v937 = vadd.f32 %v841, %v936
  %v938 = vpop.f32.mrf.mxu0
  %939 = vmatprep.mubr.bf16.mxu0 %v475
  %940 = vmatmul.mubr.bf16.gmra.mxu0 %v474
  %v941 = vpop.f32.mrf.mxu0
  %v942 = vadd.f32 %v841, %v941
  %v943 = vpop.f32.mrf.mxu0
  %v944 = vpop.f32.mrf.mxu0
  %v945 = vadd.f32 %v841, %v944
  %v946 = vpop.f32.mrf.mxu0
  %947 = vmatprep.mubr.bf16.mxu0 %v477
  %948 = vmatmul.mubr.bf16.gmra.mxu0 %v476
  %v949 = vpop.f32.mrf.mxu0
  %v950 = vadd.f32 %v841, %v949
  %v951 = vpop.f32.mrf.mxu0
  %v952 = vpop.f32.mrf.mxu0
  %v953 = vadd.f32 %v841, %v952
  %v954 = vpop.f32.mrf.mxu0
  %955 = vmatprep.mubr.bf16.mxu0 %v479
  %956 = vmatmul.mubr.bf16.gmra.mxu0 %v478
  %v957 = vpop.f32.mrf.mxu0
  %v958 = vadd.f32 %v841, %v957
  %v959 = vpop.f32.mrf.mxu0
  %v960 = vpop.f32.mrf.mxu0
  %v961 = vadd.f32 %v841, %v960
  %v962 = vpop.f32.mrf.mxu0
  %963 = vmatprep.mubr.bf16.mxu0 %v481
  %964 = vmatmul.mubr.bf16.gmra.mxu0 %v480
  %v965 = vpop.f32.mrf.mxu0
  %v966 = vadd.f32 %v841, %v965
  %v967 = vpop.f32.mrf.mxu0
  %v968 = vpop.f32.mrf.mxu0
  %v969 = vadd.f32 %v841, %v968
  %v970 = vpop.f32.mrf.mxu0
  %971 = vmatprep.mubr.bf16.mxu0 %v483
  %972 = vmatmul.mubr.bf16.gmra.mxu0 %v482
  %v973 = vpop.f32.mrf.mxu0
  %v974 = vadd.f32 %v841, %v973
  %v975 = vpop.f32.mrf.mxu0
  %v976 = vpop.f32.mrf.mxu0
  %v977 = vadd.f32 %v841, %v976
  %v978 = vpop.f32.mrf.mxu0
  %979 = vmatprep.mubr.bf16.mxu0 %v485
  %980 = vmatmul.mubr.bf16.gmra.mxu0 %v484
  %v981 = vpop.f32.mrf.mxu0
  %v982 = vadd.f32 %v841, %v981
  %v983 = vpop.f32.mrf.mxu0
  %v984 = vpop.f32.mrf.mxu0
  %v985 = vadd.f32 %v841, %v984
  %v986 = vpop.f32.mrf.mxu0
  %987 = vmatprep.mubr.bf16.mxu0 %v487
  %988 = vmatmul.mubr.bf16.gmra.mxu0 %v486
  %v989 = vpop.f32.mrf.mxu0
  %v990 = vadd.f32 %v841, %v989
  %v991 = vpop.f32.mrf.mxu0
  %v992 = vpop.f32.mrf.mxu0
  %v993 = vadd.f32 %v841, %v992
  %v994 = vpop.f32.mrf.mxu0
  %995 = vmatprep.mubr.bf16.mxu0 %v489
  %996 = vmatmul.mubr.bf16.gmra.mxu0 %v488
  %v997 = vpop.f32.mrf.mxu0
  %v998 = vadd.f32 %v841, %v997
  %v999 = vpop.f32.mrf.mxu0
  %v1000 = vpop.f32.mrf.mxu0
  %v1001 = vadd.f32 %v841, %v1000
  %v1002 = vpop.f32.mrf.mxu0
  %1003 = vdwg.mxu0
  %v1004 = vmax.f32 %v878, 0.0
  %v1005 = vmax.f32 %v881, 0.0
  %v1006 = vmax.f32 %v886, 0.0
  %v1007 = vmax.f32 %v889, 0.0
  %v1008 = vmax.f32 %v894, 0.0
  %v1009 = vmax.f32 %v897, 0.0
  %v1010 = vmax.f32 %v902, 0.0
  %v1011 = vmax.f32 %v905, 0.0
  %v1012 = vmax.f32 %v910, 0.0
  %v1013 = vmax.f32 %v913, 0.0
  %v1014 = vmax.f32 %v918, 0.0
  %v1015 = vmax.f32 %v921, 0.0
  %v1016 = vmax.f32 %v926, 0.0
  %v1017 = vmax.f32 %v929, 0.0
  %v1018 = vmax.f32 %v934, 0.0
  %v1019 = vmax.f32 %v937, 0.0
  %v1020 = vmax.f32 %v942, 0.0
  %v1021 = vmax.f32 %v945, 0.0
  %v1022 = vmax.f32 %v950, 0.0
  %v1023 = vmax.f32 %v953, 0.0
  %v1024 = vmax.f32 %v958, 0.0
  %v1025 = vmax.f32 %v961, 0.0
  %v1026 = vmax.f32 %v966, 0.0
  %v1027 = vmax.f32 %v969, 0.0
  %v1028 = vmax.f32 %v974, 0.0
  %v1029 = vmax.f32 %v977, 0.0
  %v1030 = vmax.f32 %v982, 0.0
  %v1031 = vmax.f32 %v985, 0.0
  %v1032 = vmax.f32 %v990, 0.0
  %v1033 = vmax.f32 %v993, 0.0
  %v1034 = vmax.f32 %v998, 0.0
  %v1035 = vmax.f32 %v1001, 0.0
  %v1036 = vpack.c.bf16 %v1005, %v1004
  %v1037 = vpack.c.bf16 %v1007, %v1006
  %v1038 = vpack.c.bf16 %v1009, %v1008
  %v1039 = vpack.c.bf16 %v1011, %v1010
  %v1040 = vpack.c.bf16 %v1013, %v1012
  %v1041 = vpack.c.bf16 %v1015, %v1014
  %v1042 = vpack.c.bf16 %v1017, %v1016
  %v1043 = vpack.c.bf16 %v1019, %v1018
  %v1044 = vpack.c.bf16 %v1021, %v1020
  %v1045 = vpack.c.bf16 %v1023, %v1022
  %v1046 = vpack.c.bf16 %v1025, %v1024
  %v1047 = vpack.c.bf16 %v1027, %v1026
  %v1048 = vpack.c.bf16 %v1029, %v1028
  %v1049 = vpack.c.bf16 %v1031, %v1030
  %v1050 = vpack.c.bf16 %v1033, %v1032
  %v1051 = vpack.c.bf16 %v1035, %v1034
  %v1052 = vld [vmem:[%s6] sm:$0xf]
  %v1053 = vld [vmem:[%s6 + $0x4] sm:$0xf]
  %v1056 = vunpack.c.l.b16 %v1052
  %v1057 = vunpack.c.l.b16 %v1053
  %v1058 = vpack.c.b16 %v1057, %v1056
  %v1061 = vsel %vm610, %v1036, 0
  %v1064 = vsel %vm610, %v1037, 0
  %v1067 = vsel %vm610, %v1038, 0
  %v1070 = vsel %vm610, %v1039, 0
  %v1073 = vsel %vm610, %v1040, 0
  %v1076 = vsel %vm610, %v1041, 0
  %v1079 = vsel %vm610, %v1042, 0
  %v1082 = vsel %vm610, %v1043, 0
  %v1085 = vsel %vm610, %v1044, 0
  %v1088 = vsel %vm610, %v1045, 0
  %v1091 = vsel %vm610, %v1046, 0
  %v1094 = vsel %vm610, %v1047, 0
  %v1097 = vsel %vm610, %v1048, 0
  %v1100 = vsel %vm610, %v1049, 0
  %v1103 = vsel %vm610, %v1050, 0
  %v1106 = vsel %vm610, %v1051, 0
  %1108 = vmatprep.subr.bf16.mxu0 0
  %1109 = vmatpush1.bf16.msra.mxu0 0
  %1110 = vmatprep.subr.bf16.mxu0 0
  %1111 = vmatpush1.bf16.msra.mxu0 0
  %1112 = vmatprep.subr.bf16.mxu0 0
  %1113 = vmatpush1.bf16.msra.mxu0 0
  %1114 = vmatprep.subr.bf16.mxu0 0
  %1115 = vmatpush1.bf16.msra.mxu0 0
  %1116 = vmatprep.subr.bf16.mxu0 0
  %1117 = vmatpush1.bf16.msra.mxu0 0
  %1118 = vmatprep.subr.bf16.mxu0 0
  %1119 = vmatpush1.bf16.msra.mxu0 0
  %1120 = vmatprep.subr.bf16.mxu0 0
  %1121 = vmatpush1.bf16.msra.mxu0 0
  %1122 = vmatprep.subr.bf16.mxu0 0
  %1123 = vmatpush1.bf16.msra.mxu0 %v1058
  %1124 = vmatprep.subr.bf16.mxu0 0
  %1125 = vmatpush2.bf16.msra.mxu0 0
  %1126 = vmatprep.subr.bf16.mxu0 0
  %1127 = vmatpush2.bf16.msra.mxu0 0
  %1128 = vmatprep.subr.bf16.mxu0 0
  %1129 = vmatpush2.bf16.msra.mxu0 0
  %1130 = vmatprep.subr.bf16.mxu0 0
  %1131 = vmatpush2.bf16.msra.mxu0 0
  %1132 = vmatprep.subr.bf16.mxu0 0
  %1133 = vmatpush2.bf16.msra.mxu0 0
  %1134 = vmatprep.subr.bf16.mxu0 0
  %1135 = vmatpush2.bf16.msra.mxu0 0
  %1136 = vmatprep.subr.bf16.mxu0 0
  %1137 = vmatpush2.bf16.msra.mxu0 0
  %1138 = vmatprep.subr.bf16.mxu0 0
  %1139 = vmatpush2.bf16.msra.mxu0 0
  %1140 = vmatprep.mubr.bf16.mxu0 0
  %1141 = vmatmul.mubr.bf16.gmra.mxu0 %v1061
  %v1142 = vpop.f32.mrf.mxu0
  %v1143 = vadd.f32 0.0, %v1142
  %v1144 = vpop.f32.mrf.mxu0
  %v1145 = vpop.f32.mrf.mxu0
  %v1146 = vadd.f32 0.0, %v1145
  %v1147 = vpop.f32.mrf.mxu0
  %1148 = vmatprep.mubr.bf16.mxu0 0
  %1149 = vmatmul.mubr.bf16.gmra.mxu0 %v1064
  %v1150 = vpop.f32.mrf.mxu0
  %v1151 = vadd.f32 0.0, %v1150
  %v1152 = vpop.f32.mrf.mxu0
  %v1153 = vpop.f32.mrf.mxu0
  %v1154 = vadd.f32 0.0, %v1153
  %v1155 = vpop.f32.mrf.mxu0
  %1156 = vmatprep.mubr.bf16.mxu0 0
  %1157 = vmatmul.mubr.bf16.gmra.mxu0 %v1067
  %v1158 = vpop.f32.mrf.mxu0
  %v1159 = vadd.f32 0.0, %v1158
  %v1160 = vpop.f32.mrf.mxu0
  %v1161 = vpop.f32.mrf.mxu0
  %v1162 = vadd.f32 0.0, %v1161
  %v1163 = vpop.f32.mrf.mxu0
  %1164 = vmatprep.mubr.bf16.mxu0 0
  %1165 = vmatmul.mubr.bf16.gmra.mxu0 %v1070
  %v1166 = vpop.f32.mrf.mxu0
  %v1167 = vadd.f32 0.0, %v1166
  %v1168 = vpop.f32.mrf.mxu0
  %v1169 = vpop.f32.mrf.mxu0
  %v1170 = vadd.f32 0.0, %v1169
  %v1171 = vpop.f32.mrf.mxu0
  %1172 = vmatprep.mubr.bf16.mxu0 0
  %1173 = vmatmul.mubr.bf16.gmra.mxu0 %v1073
  %v1174 = vpop.f32.mrf.mxu0
  %v1175 = vadd.f32 0.0, %v1174
  %v1176 = vpop.f32.mrf.mxu0
  %v1177 = vpop.f32.mrf.mxu0
  %v1178 = vadd.f32 0.0, %v1177
  %v1179 = vpop.f32.mrf.mxu0
  %1180 = vmatprep.mubr.bf16.mxu0 0
  %1181 = vmatmul.mubr.bf16.gmra.mxu0 %v1076
  %v1182 = vpop.f32.mrf.mxu0
  %v1183 = vadd.f32 0.0, %v1182
  %v1184 = vpop.f32.mrf.mxu0
  %v1185 = vpop.f32.mrf.mxu0
  %v1186 = vadd.f32 0.0, %v1185
  %v1187 = vpop.f32.mrf.mxu0
  %1188 = vmatprep.mubr.bf16.mxu0 0
  %1189 = vmatmul.mubr.bf16.gmra.mxu0 %v1079
  %v1190 = vpop.f32.mrf.mxu0
  %v1191 = vadd.f32 0.0, %v1190
  %v1192 = vpop.f32.mrf.mxu0
  %v1193 = vpop.f32.mrf.mxu0
  %v1194 = vadd.f32 0.0, %v1193
  %v1195 = vpop.f32.mrf.mxu0
  %1196 = vmatprep.mubr.bf16.mxu0 0
  %1197 = vmatmul.mubr.bf16.gmra.mxu0 %v1082
  %v1198 = vpop.f32.mrf.mxu0
  %v1199 = vadd.f32 0.0, %v1198
  %v1200 = vpop.f32.mrf.mxu0
  %v1201 = vpop.f32.mrf.mxu0
  %v1202 = vadd.f32 0.0, %v1201
  %v1203 = vpop.f32.mrf.mxu0
  %1204 = vmatprep.mubr.bf16.mxu0 0
  %1205 = vmatmul.mubr.bf16.gmra.mxu0 %v1085
  %v1206 = vpop.f32.mrf.mxu0
  %v1207 = vadd.f32 0.0, %v1206
  %v1208 = vpop.f32.mrf.mxu0
  %v1209 = vpop.f32.mrf.mxu0
  %v1210 = vadd.f32 0.0, %v1209
  %v1211 = vpop.f32.mrf.mxu0
  %1212 = vmatprep.mubr.bf16.mxu0 0
  %1213 = vmatmul.mubr.bf16.gmra.mxu0 %v1088
  %v1214 = vpop.f32.mrf.mxu0
  %v1215 = vadd.f32 0.0, %v1214
  %v1216 = vpop.f32.mrf.mxu0
  %v1217 = vpop.f32.mrf.mxu0
  %v1218 = vadd.f32 0.0, %v1217
  %v1219 = vpop.f32.mrf.mxu0
  %1220 = vmatprep.mubr.bf16.mxu0 0
  %1221 = vmatmul.mubr.bf16.gmra.mxu0 %v1091
  %v1222 = vpop.f32.mrf.mxu0
  %v1223 = vadd.f32 0.0, %v1222
  %v1224 = vpop.f32.mrf.mxu0
  %v1225 = vpop.f32.mrf.mxu0
  %v1226 = vadd.f32 0.0, %v1225
  %v1227 = vpop.f32.mrf.mxu0
  %1228 = vmatprep.mubr.bf16.mxu0 0
  %1229 = vmatmul.mubr.bf16.gmra.mxu0 %v1094
  %v1230 = vpop.f32.mrf.mxu0
  %v1231 = vadd.f32 0.0, %v1230
  %v1232 = vpop.f32.mrf.mxu0
  %v1233 = vpop.f32.mrf.mxu0
  %v1234 = vadd.f32 0.0, %v1233
  %v1235 = vpop.f32.mrf.mxu0
  %1236 = vmatprep.mubr.bf16.mxu0 0
  %1237 = vmatmul.mubr.bf16.gmra.mxu0 %v1097
  %v1238 = vpop.f32.mrf.mxu0
  %v1239 = vadd.f32 0.0, %v1238
  %v1240 = vpop.f32.mrf.mxu0
  %v1241 = vpop.f32.mrf.mxu0
  %v1242 = vadd.f32 0.0, %v1241
  %v1243 = vpop.f32.mrf.mxu0
  %1244 = vmatprep.mubr.bf16.mxu0 0
  %1245 = vmatmul.mubr.bf16.gmra.mxu0 %v1100
  %v1246 = vpop.f32.mrf.mxu0
  %v1247 = vadd.f32 0.0, %v1246
  %v1248 = vpop.f32.mrf.mxu0
  %v1249 = vpop.f32.mrf.mxu0
  %v1250 = vadd.f32 0.0, %v1249
  %v1251 = vpop.f32.mrf.mxu0
  %1252 = vmatprep.mubr.bf16.mxu0 0
  %1253 = vmatmul.mubr.bf16.gmra.mxu0 %v1103
  %v1254 = vpop.f32.mrf.mxu0
  %v1255 = vadd.f32 0.0, %v1254
  %v1256 = vpop.f32.mrf.mxu0
  %v1257 = vpop.f32.mrf.mxu0
  %v1258 = vadd.f32 0.0, %v1257
  %v1259 = vpop.f32.mrf.mxu0
  %1260 = vmatprep.mubr.bf16.mxu0 0
  %1261 = vmatmul.mubr.bf16.gmra.mxu0 %v1106
  %v1262 = vpop.f32.mrf.mxu0
  %v1263 = vadd.f32 0.0, %v1262
  %v1264 = vpop.f32.mrf.mxu0
  %v1265 = vpop.f32.mrf.mxu0
  %v1266 = vadd.f32 0.0, %v1265
  %v1267 = vpop.f32.mrf.mxu0
  %1268 = vdwg.mxu0
  %v1269 = vpack.c.bf16 %v1146, %v1143
  %v1270 = vpack.c.bf16 %v1154, %v1151
  %v1271 = vpack.c.bf16 %v1162, %v1159
  %v1272 = vpack.c.bf16 %v1170, %v1167
  %v1273 = vpack.c.bf16 %v1178, %v1175
  %v1274 = vpack.c.bf16 %v1186, %v1183
  %v1275 = vpack.c.bf16 %v1194, %v1191
  %v1276 = vpack.c.bf16 %v1202, %v1199
  %v1277 = vpack.c.bf16 %v1210, %v1207
  %v1278 = vpack.c.bf16 %v1218, %v1215
  %v1279 = vpack.c.bf16 %v1226, %v1223
  %v1280 = vpack.c.bf16 %v1234, %v1231
  %v1281 = vpack.c.bf16 %v1242, %v1239
  %v1282 = vpack.c.bf16 %v1250, %v1247
  %v1283 = vpack.c.bf16 %v1258, %v1255
  %v1284 = vpack.c.bf16 %v1266, %v1263
  %v1285 = vld [vmem:[%s7] sm:$0x1]
  %v1287 = vlaneseq
  %v1288 = vshrl.u32 %v1287, 7
  %v1289 = vsub.s32 0, %v1288
  %v1290 = vrot.slane %v1285, %v1289
  %1292 = vmatprep.subr.bf16.mxu0 0
  %1293 = vmatpush1.bf16.msra.mxu0 %v1276
  %1294 = vmatprep.subr.bf16.mxu0 0
  %1295 = vmatpush1.bf16.msra.mxu0 %v1275
  %1296 = vmatprep.subr.bf16.mxu0 0
  %1297 = vmatpush1.bf16.msra.mxu0 %v1274
  %1298 = vmatprep.subr.bf16.mxu0 0
  %1299 = vmatpush1.bf16.msra.mxu0 %v1273
  %1300 = vmatprep.subr.bf16.mxu0 0
  %1301 = vmatpush1.bf16.msra.mxu0 %v1272
  %1302 = vmatprep.subr.bf16.mxu0 0
  %1303 = vmatpush1.bf16.msra.mxu0 %v1271
  %1304 = vmatprep.subr.bf16.mxu0 0
  %1305 = vmatpush1.bf16.msra.mxu0 %v1270
  %1306 = vmatprep.subr.bf16.mxu0 0
  %1307 = vmatpush1.bf16.msra.mxu0 %v1269
  %1308 = vmatprep.subr.bf16.mxu0 0
  %1309 = vmatpush2.bf16.msra.mxu0 %v1284
  %1310 = vmatprep.subr.bf16.mxu0 0
  %1311 = vmatpush2.bf16.msra.mxu0 %v1283
  %1312 = vmatprep.subr.bf16.mxu0 0
  %1313 = vmatpush2.bf16.msra.mxu0 %v1282
  %1314 = vmatprep.subr.bf16.mxu0 0
  %1315 = vmatpush2.bf16.msra.mxu0 %v1281
  %1316 = vmatprep.subr.bf16.mxu0 0
  %1317 = vmatpush2.bf16.msra.mxu0 %v1280
  %1318 = vmatprep.subr.bf16.mxu0 0
  %1319 = vmatpush2.bf16.msra.mxu0 %v1279
  %1320 = vmatprep.subr.bf16.mxu0 0
  %1321 = vmatpush2.bf16.msra.mxu0 %v1278
  %1322 = vmatprep.subr.bf16.mxu0 0
  %1323 = vmatpush2.bf16.msra.mxu0 %v1277
  %1324 = vmatprep.mubr.bf16.mxu0 %v459
  %1325 = vmatmul.mubr.bf16.gmra.mxu0 %v458
  %v1326 = vpop.f32.mrf.mxu0
  %v1327 = vadd.f32 %v1290, %v1326
  %v1328 = vpop.f32.mrf.mxu0
  %v1329 = vpop.f32.mrf.mxu0
  %v1330 = vadd.f32 %v1290, %v1329
  %v1331 = vpop.f32.mrf.mxu0
  %1332 = vmatprep.mubr.bf16.mxu0 %v461
  %1333 = vmatmul.mubr.bf16.gmra.mxu0 %v460
  %v1334 = vpop.f32.mrf.mxu0
  %v1335 = vadd.f32 %v1290, %v1334
  %v1336 = vpop.f32.mrf.mxu0
  %v1337 = vpop.f32.mrf.mxu0
  %v1338 = vadd.f32 %v1290, %v1337
  %v1339 = vpop.f32.mrf.mxu0
  %1340 = vmatprep.mubr.bf16.mxu0 %v463
  %1341 = vmatmul.mubr.bf16.gmra.mxu0 %v462
  %v1342 = vpop.f32.mrf.mxu0
  %v1343 = vadd.f32 %v1290, %v1342
  %v1344 = vpop.f32.mrf.mxu0
  %v1345 = vpop.f32.mrf.mxu0
  %v1346 = vadd.f32 %v1290, %v1345
  %v1347 = vpop.f32.mrf.mxu0
  %1348 = vmatprep.mubr.bf16.mxu0 %v465
  %1349 = vmatmul.mubr.bf16.gmra.mxu0 %v464
  %v1350 = vpop.f32.mrf.mxu0
  %v1351 = vadd.f32 %v1290, %v1350
  %v1352 = vpop.f32.mrf.mxu0
  %v1353 = vpop.f32.mrf.mxu0
  %v1354 = vadd.f32 %v1290, %v1353
  %v1355 = vpop.f32.mrf.mxu0
  %1356 = vmatprep.mubr.bf16.mxu0 %v467
  %1357 = vmatmul.mubr.bf16.gmra.mxu0 %v466
  %v1358 = vpop.f32.mrf.mxu0
  %v1359 = vadd.f32 %v1290, %v1358
  %v1360 = vpop.f32.mrf.mxu0
  %v1361 = vpop.f32.mrf.mxu0
  %v1362 = vadd.f32 %v1290, %v1361
  %v1363 = vpop.f32.mrf.mxu0
  %1364 = vmatprep.mubr.bf16.mxu0 %v469
  %1365 = vmatmul.mubr.bf16.gmra.mxu0 %v468
  %v1366 = vpop.f32.mrf.mxu0
  %v1367 = vadd.f32 %v1290, %v1366
  %v1368 = vpop.f32.mrf.mxu0
  %v1369 = vpop.f32.mrf.mxu0
  %v1370 = vadd.f32 %v1290, %v1369
  %v1371 = vpop.f32.mrf.mxu0
  %1372 = vmatprep.mubr.bf16.mxu0 %v471
  %1373 = vmatmul.mubr.bf16.gmra.mxu0 %v470
  %v1374 = vpop.f32.mrf.mxu0
  %v1375 = vadd.f32 %v1290, %v1374
  %v1376 = vpop.f32.mrf.mxu0
  %v1377 = vpop.f32.mrf.mxu0
  %v1378 = vadd.f32 %v1290, %v1377
  %v1379 = vpop.f32.mrf.mxu0
  %1380 = vmatprep.mubr.bf16.mxu0 %v473
  %1381 = vmatmul.mubr.bf16.gmra.mxu0 %v472
  %v1382 = vpop.f32.mrf.mxu0
  %v1383 = vadd.f32 %v1290, %v1382
  %v1384 = vpop.f32.mrf.mxu0
  %v1385 = vpop.f32.mrf.mxu0
  %v1386 = vadd.f32 %v1290, %v1385
  %v1387 = vpop.f32.mrf.mxu0
  %1388 = vmatprep.mubr.bf16.mxu0 %v475
  %1389 = vmatmul.mubr.bf16.gmra.mxu0 %v474
  %v1390 = vpop.f32.mrf.mxu0
  %v1391 = vadd.f32 %v1290, %v1390
  %v1392 = vpop.f32.mrf.mxu0
  %v1393 = vpop.f32.mrf.mxu0
  %v1394 = vadd.f32 %v1290, %v1393
  %v1395 = vpop.f32.mrf.mxu0
  %1396 = vmatprep.mubr.bf16.mxu0 %v477
  %1397 = vmatmul.mubr.bf16.gmra.mxu0 %v476
  %v1398 = vpop.f32.mrf.mxu0
  %v1399 = vadd.f32 %v1290, %v1398
  %v1400 = vpop.f32.mrf.mxu0
  %v1401 = vpop.f32.mrf.mxu0
  %v1402 = vadd.f32 %v1290, %v1401
  %v1403 = vpop.f32.mrf.mxu0
  %1404 = vmatprep.mubr.bf16.mxu0 %v479
  %1405 = vmatmul.mubr.bf16.gmra.mxu0 %v478
  %v1406 = vpop.f32.mrf.mxu0
  %v1407 = vadd.f32 %v1290, %v1406
  %v1408 = vpop.f32.mrf.mxu0
  %v1409 = vpop.f32.mrf.mxu0
  %v1410 = vadd.f32 %v1290, %v1409
  %v1411 = vpop.f32.mrf.mxu0
  %1412 = vmatprep.mubr.bf16.mxu0 %v481
  %1413 = vmatmul.mubr.bf16.gmra.mxu0 %v480
  %v1414 = vpop.f32.mrf.mxu0
  %v1415 = vadd.f32 %v1290, %v1414
  %v1416 = vpop.f32.mrf.mxu0
  %v1417 = vpop.f32.mrf.mxu0
  %v1418 = vadd.f32 %v1290, %v1417
  %v1419 = vpop.f32.mrf.mxu0
  %1420 = vmatprep.mubr.bf16.mxu0 %v483
  %1421 = vmatmul.mubr.bf16.gmra.mxu0 %v482
  %v1422 = vpop.f32.mrf.mxu0
  %v1423 = vadd.f32 %v1290, %v1422
  %v1424 = vpop.f32.mrf.mxu0
  %v1425 = vpop.f32.mrf.mxu0
  %v1426 = vadd.f32 %v1290, %v1425
  %v1427 = vpop.f32.mrf.mxu0
  %1428 = vmatprep.mubr.bf16.mxu0 %v485
  %1429 = vmatmul.mubr.bf16.gmra.mxu0 %v484
  %v1430 = vpop.f32.mrf.mxu0
  %v1431 = vadd.f32 %v1290, %v1430
  %v1432 = vpop.f32.mrf.mxu0
  %v1433 = vpop.f32.mrf.mxu0
  %v1434 = vadd.f32 %v1290, %v1433
  %v1435 = vpop.f32.mrf.mxu0
  %1436 = vmatprep.mubr.bf16.mxu0 %v487
  %1437 = vmatmul.mubr.bf16.gmra.mxu0 %v486
  %v1438 = vpop.f32.mrf.mxu0
  %v1439 = vadd.f32 %v1290, %v1438
  %v1440 = vpop.f32.mrf.mxu0
  %v1441 = vpop.f32.mrf.mxu0
  %v1442 = vadd.f32 %v1290, %v1441
  %v1443 = vpop.f32.mrf.mxu0
  %1444 = vmatprep.mubr.bf16.mxu0 %v489
  %1445 = vmatmul.mubr.bf16.gmra.mxu0 %v488
  %v1446 = vpop.f32.mrf.mxu0
  %v1447 = vadd.f32 %v1290, %v1446
  %v1448 = vpop.f32.mrf.mxu0
  %v1449 = vpop.f32.mrf.mxu0
  %v1450 = vadd.f32 %v1290, %v1449
  %v1451 = vpop.f32.mrf.mxu0
  %1452 = vdwg.mxu0
  %1453 = vst.msk [vmem:[%s8] sm:$0xff] %vm610, %v1327
  %1454 = vst.msk [vmem:[%s8 + $0x8] sm:$0xff] %vm610, %v1330
  %1455 = vst.msk [vmem:[%s8 + $0x10] sm:$0xff] %vm610, %v1335
  %1456 = vst.msk [vmem:[%s8 + $0x18] sm:$0xff] %vm610, %v1338
  %1457 = vst.msk [vmem:[%s8 + $0x20] sm:$0xff] %vm610, %v1343
  %1458 = vst.msk [vmem:[%s8 + $0x28] sm:$0xff] %vm610, %v1346
  %1459 = vst.msk [vmem:[%s8 + $0x30] sm:$0xff] %vm610, %v1351
  %1460 = vst.msk [vmem:[%s8 + $0x38] sm:$0xff] %vm610, %v1354
  %1461 = vst.msk [vmem:[%s8 + $0x40] sm:$0xff] %vm610, %v1359
  %1462 = vst.msk [vmem:[%s8 + $0x48] sm:$0xff] %vm610, %v1362
  %1463 = vst.msk [vmem:[%s8 + $0x50] sm:$0xff] %vm610, %v1367
  %1464 = vst.msk [vmem:[%s8 + $0x58] sm:$0xff] %vm610, %v1370
  %1465 = vst.msk [vmem:[%s8 + $0x60] sm:$0xff] %vm610, %v1375
  %1466 = vst.msk [vmem:[%s8 + $0x68] sm:$0xff] %vm610, %v1378
  %1467 = vst.msk [vmem:[%s8 + $0x70] sm:$0xff] %vm610, %v1383
  %1468 = vst.msk [vmem:[%s8 + $0x78] sm:$0xff] %vm610, %v1386
  %1469 = vst.msk [vmem:[%s8 + $0x80] sm:$0xff] %vm610, %v1391
  %1470 = vst.msk [vmem:[%s8 + $0x88] sm:$0xff] %vm610, %v1394
  %1471 = vst.msk [vmem:[%s8 + $0x90] sm:$0xff] %vm610, %v1399
  %1472 = vst.msk [vmem:[%s8 + $0x98] sm:$0xff] %vm610, %v1402
  %1473 = vst.msk [vmem:[%s8 + $0xa0] sm:$0xff] %vm610, %v1407
  %1474 = vst.msk [vmem:[%s8 + $0xa8] sm:$0xff] %vm610, %v1410
  %1475 = vst.msk [vmem:[%s8 + $0xb0] sm:$0xff] %vm610, %v1415
  %1476 = vst.msk [vmem:[%s8 + $0xb8] sm:$0xff] %vm610, %v1418
  %1477 = vst.msk [vmem:[%s8 + $0xc0] sm:$0xff] %vm610, %v1423
  %1478 = vst.msk [vmem:[%s8 + $0xc8] sm:$0xff] %vm610, %v1426
  %1479 = vst.msk [vmem:[%s8 + $0xd0] sm:$0xff] %vm610, %v1431
  %1480 = vst.msk [vmem:[%s8 + $0xd8] sm:$0xff] %vm610, %v1434
  %1481 = vst.msk [vmem:[%s8 + $0xe0] sm:$0xff] %vm610, %v1439
  %1482 = vst.msk [vmem:[%s8 + $0xe8] sm:$0xff] %vm610, %v1442
  %1483 = vst.msk [vmem:[%s8 + $0xf0] sm:$0xff] %vm610, %v1447
  %1484 = vst.msk [vmem:[%s8 + $0xf8] sm:$0xff] %vm610, %v1450
  // Predicated region
  $region34: #{tpu_custom_call.1} parent=0 // pred_check
    _
  $region35: #{tpu_custom_call.1} parent=0 // pred_check_branch
    %1486 = sbr.rel (0) target = $region37
  $region36: #{tpu_custom_call.1} parent=0 // pred_region
    _
  $region37: #{tpu_custom_call.1} parent=0 // pred_fallthru
    _
  // Predicated region
  $region38: #{tpu_custom_call.1} parent=0 // pred_check
    _
  $region39: #{tpu_custom_call.1} parent=0 // pred_check_branch
    %1488 = sbr.rel (0) target = $region41
  $region40: #{tpu_custom_call.1} parent=0 // pred_region
    _
  $region41: #{tpu_custom_call.1} parent=0 // pred_fallthru
    _

</llo_original>
